<compile_context>
chip_gen: v5e
topology: v5e:2x2
jax: 0.10.0
libtpu: 0.0.40
codegen_flags: <defaults>
</compile_context>

<pallas_src>
import functools

import jax
import jax.numpy as jnp
from jax.experimental import pallas as pl
from jax.experimental.pallas import tpu as pltpu

LANE = 128
TM = 512       # node-row tile (output rows)
TK = 1024      # reduction (neighbor) tile; planner keeps tk % tm == 0


def _round_up(x, m):
    return (x + m - 1) // m * m


def _vmem_budget_bytes():
    """Per-core VMEM budget from hardware (v7x ~48 MiB, v5e/v6e ~96 MiB)."""
    cap = 64 * 1024 * 1024
    try:
        info = pltpu.get_tpu_info()
        cap = int(getattr(info, "vmem_capacity_bytes", cap))
    except Exception:
        pass
    return (cap * 3) // 4


def _plan_tiles(n, tm, tk):
    """Clamp tiles to the graph; keep tk a multiple of tm so padding = tk."""
    n_lane = _round_up(n, LANE)
    tm = max(LANE, min(_round_up(tm, LANE), n_lane))
    tk = max(tm, min(_round_up(tk, LANE), n_lane))
    tk = max(tm, (tk // tm) * tm)            # tk % tm == 0
    n_pad = _round_up(n, tk)
    # v7x megacore: prefer an even number of row tiles so the "parallel" axis
    # splits evenly across the two TensorCores (no-op on v5e/v6e).
    if (n_pad // tm) % 2 == 1 and tm % (2 * LANE) == 0:
        tm //= 2
    return n_pad, tm, tk


def prepare_adjacency(adj_hat, *, tm=TM, tk=TK):
    """Pad + bf16-cast the dense normalized Â once per graph (hoisted out of jit)."""
    n = adj_hat.shape[0]
    n_pad, tm_eff, tk_eff = _plan_tiles(n, tm, tk)
    adj_bf = jnp.zeros((n_pad, n_pad), jnp.bfloat16)
    adj_bf = adj_bf.at[:n, :n].set(adj_hat.astype(jnp.bfloat16))
    return adj_bf, tm_eff, tk_eff


# ------------------------------ Pallas kernels --------------------------------
def _fused_kernel(adj_ref, xw1_ref, b1_ref, w2_ref, b2_ref, out_ref):
    """Small-graph fast path: both propagations in one VMEM-resident kernel."""
    h = jnp.maximum(
        jnp.dot(adj_ref[...], xw1_ref[...], preferred_element_type=jnp.float32)
        + b1_ref[...], 0.0)
    hw2 = jnp.dot(h.astype(jnp.bfloat16), w2_ref[...],
                  preferred_element_type=jnp.float32).astype(jnp.bfloat16)
    out_ref[...] = (jnp.dot(adj_ref[...], hw2,
                            preferred_element_type=jnp.float32)
                    + b2_ref[...]).astype(out_ref.dtype)


def _gc1_resident_kernel(adj_ref, xw1_ref, b1_ref, w2_ref, hw2_ref, acc_ref, *, tk):
    """Stage 1 (resident RHS): acc += Â_tile @ XW1[k]; finalize relu(.+b1) @ W2."""
    k = pl.program_id(1)

    @pl.when(k == 0)
    def _():
        acc_ref[...] = jnp.zeros_like(acc_ref)

    off = pl.multiple_of(k * tk, tk)
    acc_ref[...] += jnp.dot(adj_ref[...], xw1_ref[pl.ds(off, tk), :],
                            preferred_element_type=jnp.float32)

    @pl.when(k == pl.num_programs(1) - 1)
    def _():
        # Note: padded rows (i >= n) become relu(b1) @ W2 (nonzero garbage);
        # harmless because the matching Â columns in stage 2 are zero and the
        # rows are sliced off at the end. Don't reuse hw2 elsewhere unsliced.
        h = jnp.maximum(acc_ref[...] + b1_ref[...], 0.0)
        hw2_ref[...] = jnp.dot(h.astype(jnp.bfloat16), w2_ref[...],
                               preferred_element_type=jnp.float32
                               ).astype(hw2_ref.dtype)


def _gc2_resident_kernel(adj_ref, hw2_ref, b2_ref, out_ref, acc_ref, *, tk):
    """Stage 2 (resident RHS): acc += Â_tile @ HW2[k]; finalize + b2."""
    k = pl.program_id(1)

    @pl.when(k == 0)
    def _():
        acc_ref[...] = jnp.zeros_like(acc_ref)

    off = pl.multiple_of(k * tk, tk)
    acc_ref[...] += jnp.dot(adj_ref[...], hw2_ref[pl.ds(off, tk), :],
                            preferred_element_type=jnp.float32)

    @pl.when(k == pl.num_programs(1) - 1)
    def _():
        out_ref[...] = (acc_ref[...] + b2_ref[...]).astype(out_ref.dtype)


def _gc1_stream_kernel(adj_ref, xw1_ref, b1_ref, w2_ref, hw2_ref, acc_ref):
    """Stage 1 (streamed K-panel fallback for very large graphs)."""
    k = pl.program_id(1)

    @pl.when(k == 0)
    def _():
        acc_ref[...] = jnp.zeros_like(acc_ref)

    acc_ref[...] += jnp.dot(adj_ref[...], xw1_ref[...],
                            preferred_element_type=jnp.float32)

    @pl.when(k == pl.num_programs(1) - 1)
    def _():
        h = jnp.maximum(acc_ref[...] + b1_ref[...], 0.0)
        hw2_ref[...] = jnp.dot(h.astype(jnp.bfloat16), w2_ref[...],
                               preferred_element_type=jnp.float32
                               ).astype(hw2_ref.dtype)


def _gc2_stream_kernel(adj_ref, hw2_ref, b2_ref, out_ref, acc_ref):
    """Stage 2 (streamed K-panel fallback for very large graphs)."""
    k = pl.program_id(1)

    @pl.when(k == 0)
    def _():
        acc_ref[...] = jnp.zeros_like(acc_ref)

    acc_ref[...] += jnp.dot(adj_ref[...], hw2_ref[...],
                            preferred_element_type=jnp.float32)

    @pl.when(k == pl.num_programs(1) - 1)
    def _():
        out_ref[...] = (acc_ref[...] + b2_ref[...]).astype(out_ref.dtype)


# -------------------------------- wrapper --------------------------------------
def gcn_encoder(adj_bf, x, params, *, tm=TM, tk=TK, force_path=None):
    """GCNEncoder forward. adj_bf is the pre-padded bf16 Â from prepare_adjacency.

    Returns [N, latent] float32.
    """
    n, f_in = x.shape
    n_pad = adj_bf.shape[0]
    hidden = params["w1"].shape[1]
    latent = params["w2"].shape[1]
    hp = _round_up(hidden, LANE)
    lp = _round_up(latent, LANE)

    budget = _vmem_budget_bytes()

    # Pad small operands to lane boundaries (zero padding contributes exact
    # zeros; padded rows/cols are sliced off at the end).
    x_p = jnp.zeros((n_pad, f_in), jnp.float32).at[:n, :].set(x)
    w1_p = jnp.zeros((f_in, hp), jnp.float32).at[:, :hidden].set(params["w1"])
    b1_p = jnp.zeros((1, hp), jnp.float32).at[:, :hidden].set(params["b1"])
    w2_p = jnp.zeros((hp, lp), jnp.float32).at[:hidden, :latent].set(params["w2"])
    b2_p = jnp.zeros((1, lp), jnp.float32).at[:, :latent].set(params["b2"])

    # Tiny O(N*F_in*hidden) transform done once in JAX; streamed bf16,
    # accumulated f32 inside the kernels.
    xw1_bf = jnp.dot(x_p, w1_p,
                     preferred_element_type=jnp.float32).astype(jnp.bfloat16)
    w2_bf = w2_p.astype(jnp.bfloat16)

    # ---------- small-graph fast path: everything fits in VMEM ----------
    fused_bytes = (n_pad * n_pad * 2          # Â (bf16)
                   + n_pad * hp * 2           # XW1 (bf16)
                   + n_pad * hp * 4           # H temp (f32)
                   + 2 * n_pad * lp * 4       # HW2 temp + out (f32)
                   + hp * lp * 2 + 8 * (hp + lp))
    use_fused = (force_path == "fused"
                 or (force_path is None and 2 * fused_bytes <= budget))

    if use_fused:
        out_p = pl.pallas_call(
            _fused_kernel,
            out_shape=jax.ShapeDtypeStruct((n_pad, lp), jnp.float32),
            grid=(1,),
            in_specs=[
                pl.BlockSpec((n_pad, n_pad), lambda i: (0, 0)),   # Â
                pl.BlockSpec((n_pad, hp), lambda i: (0, 0)),      # X@W1
                pl.BlockSpec((1, hp), lambda i: (0, 0)),          # b1
                pl.BlockSpec((hp, lp), lambda i: (0, 0)),         # W2
                pl.BlockSpec((1, lp), lambda i: (0, 0)),          # b2
            ],
            out_specs=pl.BlockSpec((n_pad, lp), lambda i: (0, 0)),
            compiler_params=pltpu.CompilerParams(
                dimension_semantics=("arbitrary",),
                vmem_limit_bytes=budget),
            cost_estimate=pl.CostEstimate(
                flops=2 * n_pad * n_pad * (hp + lp) + 2 * n_pad * hp * lp,
                transcendentals=0,
                bytes_accessed=2 * n_pad * n_pad + 2 * n_pad * hp
                + 2 * hp * lp + 4 * n_pad * lp),
        )(adj_bf, xw1_bf, b1_p, w2_bf, b2_p)
        return out_p[:n, :latent]

    # ---------- tiled two-stage path ----------
    gi, gk = n_pad // tm, n_pad // tk

    # RHS residency: hold the full XW1 / HW2 slab in VMEM so it is read from
    # HBM once instead of once per row tile. Budget 2x for buffering plus Â
    # tiles, accumulator, output blocks and W2.
    resident_bytes = (2 * n_pad * max(hp, lp) * 2   # resident RHS slab
                      + 2 * 2 * tm * tk             # Â tiles (double-buffered)
                      + tm * max(hp, lp) * 4        # accumulator scratch
                      + 2 * tm * lp * 4             # output blocks
                      + 2 * hp * lp)                # W2
    use_resident = force_path != "stream" and resident_bytes <= budget

    if use_resident:
        gc1 = functools.partial(_gc1_resident_kernel, tk=tk)
        gc2 = functools.partial(_gc2_resident_kernel, tk=tk)
        xw1_spec = pl.BlockSpec((n_pad, hp), lambda i, k: (0, 0))
        hw2_spec = pl.BlockSpec((n_pad, lp), lambda i, k: (0, 0))
        rhs_reads1 = 2 * n_pad * hp
        rhs_reads2 = 2 * n_pad * lp
    else:
        gc1 = _gc1_stream_kernel
        gc2 = _gc2_stream_kernel
        xw1_spec = pl.BlockSpec((tk, hp), lambda i, k: (k, 0))
        hw2_spec = pl.BlockSpec((tk, lp), lambda i, k: (k, 0))
        rhs_reads1 = 2 * gi * n_pad * hp
        rhs_reads2 = 2 * gi * n_pad * lp

    cparams = pltpu.CompilerParams(
        dimension_semantics=("parallel", "arbitrary"),
        vmem_limit_bytes=budget,
    )

    # ---- stage 1: HW2 = relu(Â @ XW1 + b1) @ W2 (bf16, streamed to stage 2) ----
    hw2_bf = pl.pallas_call(
        gc1,
        out_shape=jax.ShapeDtypeStruct((n_pad, lp), jnp.bfloat16),
        grid_spec=pltpu.PrefetchScalarGridSpec(
            num_scalar_prefetch=0,
            grid=(gi, gk),
            in_specs=[
                pl.BlockSpec((tm, tk), lambda i, k: (i, k)),   # Â tile
                xw1_spec,                                      # X@W1
                pl.BlockSpec((1, hp), lambda i, k: (0, 0)),    # b1
                pl.BlockSpec((hp, lp), lambda i, k: (0, 0)),   # W2 (resident)
            ],
            out_specs=pl.BlockSpec((tm, lp), lambda i, k: (i, 0)),
            scratch_shapes=[pltpu.VMEM((tm, hp), jnp.float32)],
        ),
        compiler_params=cparams,
        cost_estimate=pl.CostEstimate(
            flops=2 * n_pad * n_pad * hp + 2 * n_pad * hp * lp,
            transcendentals=0,
            bytes_accessed=2 * n_pad * n_pad + rhs_reads1
            + 2 * hp * lp + 2 * n_pad * lp),
    )(adj_bf, xw1_bf, b1_p, w2_bf)

    # ---- stage 2: OUT = Â @ HW2 + b2 -------------------------------------------
    out_p = pl.pallas_call(
        gc2,
        out_shape=jax.ShapeDtypeStruct((n_pad, lp), jnp.float32),
        grid_spec=pltpu.PrefetchScalarGridSpec(
            num_scalar_prefetch=0,
            grid=(gi, gk),
            in_specs=[
                pl.BlockSpec((tm, tk), lambda i, k: (i, k)),   # Â tile
                hw2_spec,                                      # H@W2
                pl.BlockSpec((1, lp), lambda i, k: (0, 0)),    # b2
            ],
            out_specs=pl.BlockSpec((tm, lp), lambda i, k: (i, 0)),
            scratch_shapes=[pltpu.VMEM((tm, lp), jnp.float32)],
        ),
        compiler_params=cparams,
        cost_estimate=pl.CostEstimate(
            flops=2 * n_pad * n_pad * lp,
            transcendentals=0,
            bytes_accessed=2 * n_pad * n_pad + rhs_reads2
            + 4 * lp + 4 * n_pad * lp),
    )(adj_bf, hw2_bf, b2_p)

    return out_p[:n, :latent]


gcn_encoder_jit = jax.jit(gcn_encoder, static_argnames=("tm", "tk", "force_path"))


# ------------------------------- JAX glue ---------------------------------------
def gcn_normalized_adjacency(edge_index, edge_weight, num_nodes):
    """Dense Â = D^{-1/2}(A + I)D^{-1/2}, matching PyG gcn_norm defaults.

    Note: duplicate edges are summed by the scatter-add (matches coalesced
    PyG graphs; document if your workflow expects dedup instead).
    """
    src, dst = edge_index[0], edge_index[1]
    a = jnp.zeros((num_nodes, num_nodes), jnp.float32).at[dst, src].add(edge_weight)
    a = a + jnp.eye(num_nodes, dtype=jnp.float32)  # self loops, fill 1.0
    deg = a.sum(axis=1)
    dinv = jnp.where(deg > 0, jax.lax.rsqrt(deg), 0.0)
    return dinv[:, None] * a * dinv[None, :]


def glorot(key, shape):
    fan_in, fan_out = shape
    limit = jnp.sqrt(6.0 / (fan_in + fan_out))
    return jax.random.uniform(key, shape, jnp.float32, -limit, limit)


def init_params(key, feature_size, hidden_size, latent_size):
    k1, k2, k3, k4 = jax.random.split(key, 4)
    return {
        "w1": glorot(k1, (feature_size, hidden_size)),
        "b1": 0.1 * jax.random.normal(k3, (1, hidden_size), jnp.float32),
        "w2": glorot(k2, (hidden_size, latent_size)),
        "b2": 0.1 * jax.random.normal(k4, (1, latent_size), jnp.float32),
    }


def _dot32(a, b):
    return jnp.dot(a, b, precision=jax.lax.Precision.HIGHEST)


# --------------------------------- main ------------------------------------------
if __name__ == "__main__":
    key = jax.random.PRNGKey(0)
    k_feat, k_param, k_w = jax.random.split(key, 3)

    num_nodes = 300
    feature_size, hidden_size, latent_size = 16, 64, 32

    # Node features
    x = jax.random.normal(k_feat, (num_nodes, feature_size), jnp.float32)

    # Small deterministic undirected ring graph (edges both directions)
    src = jnp.arange(num_nodes, dtype=jnp.int32)
    dst = (src + 1) % num_nodes
    edge_index = jnp.stack([jnp.concatenate([src, dst]),
                            jnp.concatenate([dst, src])], axis=0)
    ew = jax.random.uniform(k_w, (num_nodes,), jnp.float32, 0.5, 1.5)
    edge_weight = jnp.concatenate([ew, ew])  # symmetric weights

    adj_hat = gcn_normalized_adjacency(edge_index, edge_weight, num_nodes)
    params = init_params(k_param, feature_size, hidden_size, latent_size)

    # Graph is static across forward calls: pad + cast Â once, outside the jit.
    adj_bf, tm, tk = prepare_adjacency(adj_hat)

    out = gcn_encoder_jit(adj_bf, x, params, tm=tm, tk=tk)          # fused fast path
    out_tiled = gcn_encoder_jit(adj_bf, x, params, tm=tm, tk=tk,
                                force_path="tiled")                 # tiled + resident RHS
    jax.block_until_ready((out, out_tiled))
    assert out.shape == (num_nodes, latent_size)
    assert out_tiled.shape == (num_nodes, latent_size)

    # Precision-matched reference (same bf16-streaming / f32-accumulation recipe)
    bf = lambda t: t.astype(jnp.bfloat16).astype(jnp.float32)
    adj_b = bf(adj_hat)
    xw1_b = bf(_dot32(x, params["w1"]))
    h_m = jnp.maximum(_dot32(adj_b, xw1_b) + params["b1"], 0.0)
    hw2_b = bf(_dot32(bf(h_m), bf(params["w2"])))
    out_matched = _dot32(adj_b, hw2_b) + params["b2"]
    assert jnp.allclose(out, out_matched, atol=1e-2, rtol=1e-2)
    assert jnp.allclose(out_tiled, out_matched, atol=1e-2, rtol=1e-2)

    # Full-f32 reference (loose tolerance: Â and panels are streamed in bf16)
    h32 = jnp.maximum(_dot32(adj_hat, _dot32(x, params["w1"])) + params["b1"], 0.0)
    out_f32 = _dot32(adj_hat, _dot32(h32, params["w2"])) + params["b2"]
    assert jnp.allclose(out, out_f32, atol=1e-1, rtol=1e-1)
    assert jnp.allclose(out_tiled, out_f32, atol=1e-1, rtol=1e-1)

    print("KERNEL_OK")
</pallas_src>

<mosaic_0001>
module attributes {stable_mosaic.version = 11 : i64} {
  func.func @_fused_kernel(%arg0: i32, %arg1: memref<384x384xbf16, #tpu.memory_space<vmem>>, %arg2: memref<384x128xbf16, #tpu.memory_space<vmem>>, %arg3: memref<1x128xf32, #tpu.memory_space<vmem>>, %arg4: memref<128x128xbf16, #tpu.memory_space<vmem>>, %arg5: memref<1x128xf32, #tpu.memory_space<vmem>>, %arg6: memref<384x128xf32, #tpu.memory_space<vmem>>) attributes {dimension_semantics = [#tpu.dimension_semantics<arbitrary>], iteration_bounds = array<i64: 1>, scalar_prefetch = 0 : i64, scratch_operands = 0 : i64, tpu.core_type = #tpu.core_type<tc>, window_params = [{pipeline_mode = #tpu.pipeline_mode<synchronous>, transform_indices = @transform_0, window_bounds = array<i64: 384, 384>}, {pipeline_mode = #tpu.pipeline_mode<synchronous>, transform_indices = @transform_1, window_bounds = array<i64: 384, 128>}, {pipeline_mode = #tpu.pipeline_mode<synchronous>, transform_indices = @transform_2, window_bounds = array<i64: 1, 128>}, {pipeline_mode = #tpu.pipeline_mode<synchronous>, transform_indices = @transform_3, window_bounds = array<i64: 128, 128>}, {pipeline_mode = #tpu.pipeline_mode<synchronous>, transform_indices = @transform_4, window_bounds = array<i64: 1, 128>}, {pipeline_mode = #tpu.pipeline_mode<synchronous>, transform_indices = @transform_5, window_bounds = array<i64: 384, 128>}]} {
    %c0 = arith.constant 0 : index
    %c0_0 = arith.constant 0 : index
    %0 = vector.load %arg1[%c0, %c0_0] : memref<384x384xbf16, #tpu.memory_space<vmem>>, vector<384x384xbf16>
    %c0_1 = arith.constant 0 : index
    %c0_2 = arith.constant 0 : index
    %1 = vector.load %arg2[%c0_1, %c0_2] : memref<384x128xbf16, #tpu.memory_space<vmem>>, vector<384x128xbf16>
    %cst = arith.constant dense<0.000000e+00> : vector<384x128xf32>
    %2 = tpu.matmul %0, %1, %cst {dimension_numbers = #tpu.dot_dimension_numbers<[1], [0], [0], [1], [0, 0, 1, 1], [], []>} : vector<384x384xbf16>, vector<384x128xbf16>, vector<384x128xf32> -> vector<384x128xf32>
    %c0_3 = arith.constant 0 : index
    %c0_4 = arith.constant 0 : index
    %3 = vector.load %arg3[%c0_3, %c0_4] : memref<1x128xf32, #tpu.memory_space<vmem>>, vector<1x128xf32>
    %4 = vector.broadcast %3 : vector<1x128xf32> to vector<384x128xf32>
    %5 = arith.addf %2, %4 : vector<384x128xf32>
    %cst_5 = arith.constant 0.000000e+00 : f32
    %6 = vector.broadcast %cst_5 : f32 to vector<384x128xf32>
    %7 = arith.maximumf %5, %6 : vector<384x128xf32>
    %8 = arith.truncf %7 : vector<384x128xf32> to vector<384x128xbf16>
    %c0_6 = arith.constant 0 : index
    %c0_7 = arith.constant 0 : index
    %9 = vector.load %arg4[%c0_6, %c0_7] : memref<128x128xbf16, #tpu.memory_space<vmem>>, vector<128x128xbf16>
    %cst_8 = arith.constant dense<0.000000e+00> : vector<384x128xf32>
    %10 = tpu.matmul %8, %9, %cst_8 {dimension_numbers = #tpu.dot_dimension_numbers<[1], [0], [0], [1], [0, 0, 1, 1], [], []>} : vector<384x128xbf16>, vector<128x128xbf16>, vector<384x128xf32> -> vector<384x128xf32>
    %11 = arith.truncf %10 : vector<384x128xf32> to vector<384x128xbf16>
    %c0_9 = arith.constant 0 : index
    %c0_10 = arith.constant 0 : index
    %12 = vector.load %arg1[%c0_9, %c0_10] : memref<384x384xbf16, #tpu.memory_space<vmem>>, vector<384x384xbf16>
    %cst_11 = arith.constant dense<0.000000e+00> : vector<384x128xf32>
    %13 = tpu.matmul %12, %11, %cst_11 {dimension_numbers = #tpu.dot_dimension_numbers<[1], [0], [0], [1], [0, 0, 1, 1], [], []>} : vector<384x384xbf16>, vector<384x128xbf16>, vector<384x128xf32> -> vector<384x128xf32>
    %c0_12 = arith.constant 0 : index
    %c0_13 = arith.constant 0 : index
    %14 = vector.load %arg5[%c0_12, %c0_13] : memref<1x128xf32, #tpu.memory_space<vmem>>, vector<1x128xf32>
    %15 = vector.broadcast %14 : vector<1x128xf32> to vector<384x128xf32>
    %16 = arith.addf %13, %15 : vector<384x128xf32>
    %c0_14 = arith.constant 0 : index
    %c0_15 = arith.constant 0 : index
    %17 = vector.load %arg6[%c0_14, %c0_15] : memref<384x128xf32, #tpu.memory_space<vmem>>, vector<384x128xf32>
    tpu.vector_store %arg6[%c0_14, %c0_15], %16 {strides = array<i32>} : memref<384x128xf32, #tpu.memory_space<vmem>>, vector<384x128xf32>,
    return
  }
  func.func @transform_0(%arg0: i32) -> (i32, i32) {
    %c0_i32 = arith.constant 0 : i32
    %c0_i32_0 = arith.constant 0 : i32
    %c0_i32_1 = arith.constant 0 : i32
    return %c0_i32, %c0_i32_0 : i32, i32
  }
  func.func @transform_1(%arg0: i32) -> (i32, i32) {
    %c0_i32 = arith.constant 0 : i32
    %c0_i32_0 = arith.constant 0 : i32
    %c0_i32_1 = arith.constant 0 : i32
    return %c0_i32, %c0_i32_0 : i32, i32
  }
  func.func @transform_2(%arg0: i32) -> (i32, i32) {
    %c0_i32 = arith.constant 0 : i32
    %c0_i32_0 = arith.constant 0 : i32
    %c0_i32_1 = arith.constant 0 : i32
    return %c0_i32, %c0_i32_0 : i32, i32
  }
  func.func @transform_3(%arg0: i32) -> (i32, i32) {
    %c0_i32 = arith.constant 0 : i32
    %c0_i32_0 = arith.constant 0 : i32
    %c0_i32_1 = arith.constant 0 : i32
    return %c0_i32, %c0_i32_0 : i32, i32
  }
  func.func @transform_4(%arg0: i32) -> (i32, i32) {
    %c0_i32 = arith.constant 0 : i32
    %c0_i32_0 = arith.constant 0 : i32
    %c0_i32_1 = arith.constant 0 : i32
    return %c0_i32, %c0_i32_0 : i32, i32
  }
  func.func @transform_5(%arg0: i32) -> (i32, i32) {
    %c0_i32 = arith.constant 0 : i32
    %c0_i32_0 = arith.constant 0 : i32
    %c0_i32_1 = arith.constant 0 : i32
    return %c0_i32, %c0_i32_0 : i32, i32
  }
}

</mosaic_0001>

<llo_original>
// kernel: gcn_encoder.1
$region0: #{gcn_encoder.1}
  #allocation0 [shape = 'u32[]', space=smem, size = 0x4, offset = 0x4, fixed_abs, tag = 'smem constant byte address 0x4 - core index']
  #allocation1 [shape = 'u32[72,128]{1,0:T(1,128)}', space=vmem, size = 0x9000, scoped, tag = 'internal scratch']
  %s0 = inlined_call_operand.hbm [shape: bf16[384,384], index: 0, kind: input, shape index: {}]
  %s1 = inlined_call_operand.vmem [shape: bf16[384,128], index: 1, kind: input, shape index: {}]
  %s2 = inlined_call_operand.vmem [shape: f32[1,128], index: 2, kind: input, shape index: {}]
  %s3 = inlined_call_operand.vmem [shape: bf16[128,128], index: 3, kind: input, shape index: {}]
  %s4 = inlined_call_operand.vmem [shape: f32[1,128], index: 4, kind: input, shape index: {}]
  %s5 = inlined_call_operand.vmem [shape: f32[384,128], index: 5, kind: output, shape index: {}]
  %s6 = sld [smem:[#allocation0]]
  $region34: #{gcn_encoder.1} parent=0
    _
  %s8 = ssub.s32 1, %s6
  %s9 = scalar_select 0, %s8, %s6
  $region1: #{gcn_encoder.1} parent=0
    #allocation2 [shape = 'u8[294912]{0}', space=vmem, size = 0x48000, scoped, tag = 'input window, operand 0, single buffered']
    #allocation3 [shape = 's32[1]{0}', space=sflag, size = 0x4, scoped, tag = 'scoped memory for gcn_encoder.1']
    %10 = vsyncpa [#allocation3], 0
    // Predicated region
    $region2: #{gcn_encoder.1} parent=1 // pred_check
      _
    $region3: #{gcn_encoder.1} parent=1 // pred_check_branch
      %12 = sbr.rel (0) target = $region5
    $region4: #{gcn_encoder.1} parent=1 // pred_region
      %14 = vsyncadd [#allocation3], 0
      %s15 = sshll.u32 %s0, 4
      %s16 = int_to_ptr.hbm [resolvable:$true] %s15
      %s17 = sshll.u32 [#allocation2], 4
      %s18 = int_to_ptr.vmem [resolvable:$true] %s17
      %23 = dma.hbm_to_vmem [thread:$0]  %s16, 9216, %s18, [#allocation3], 192, 192, 12
    $region5: #{gcn_encoder.1} parent=1 // pred_fallthru
      _
    // Predicated region
    $region6: #{gcn_encoder.1} parent=1 // pred_check
      _
    $region7: #{gcn_encoder.1} parent=1 // pred_check_branch
      %25 = sbr.rel (0) target = $region9
    $region8: #{gcn_encoder.1} parent=1 // pred_region
      _
    $region9: #{gcn_encoder.1} parent=1 // pred_fallthru
      _
    // Predicated region
    $region10: #{gcn_encoder.1} parent=1 // pred_check
      _
    $region11: #{gcn_encoder.1} parent=1 // pred_check_branch
      %27 = sbr.rel (0) target = $region13
    $region12: #{gcn_encoder.1} parent=1 // pred_region
      _
    $region13: #{gcn_encoder.1} parent=1 // pred_fallthru
      _
    // Predicated region
    $region14: #{gcn_encoder.1} parent=1 // pred_check
      _
    $region15: #{gcn_encoder.1} parent=1 // pred_check_branch
      %29 = sbr.rel (0) target = $region17
    $region16: #{gcn_encoder.1} parent=1 // pred_region
      _
    $region17: #{gcn_encoder.1} parent=1 // pred_fallthru
      _
    // Predicated region
    $region18: #{gcn_encoder.1} parent=1 // pred_check
      _
    $region19: #{gcn_encoder.1} parent=1 // pred_check_branch
      %31 = sbr.rel (0) target = $region21
    $region20: #{gcn_encoder.1} parent=1 // pred_region
      _
    $region21: #{gcn_encoder.1} parent=1 // pred_fallthru
      _
    // Predicated region
    $region22: #{gcn_encoder.1} parent=1 // pred_check
      _
    $region23: #{gcn_encoder.1} parent=1 // pred_check_branch
      %33 = sbr.rel (0) target = $region25
    $region24: #{gcn_encoder.1} parent=1 // pred_region
      %35 = dma.done [#allocation3], 9216
    $region25: #{gcn_encoder.1} parent=1 // pred_fallthru
      _
    %v36 = vld [vmem:[#allocation2] sm:$0xff]
    %v37 = vld [vmem:[#allocation2 + $0x8] sm:$0xf]
    %v38 = vld [vmem:[#allocation2 + $0xc] sm:$0xff]
    %v39 = vld [vmem:[#allocation2 + $0x14] sm:$0xf]
    %v40 = vld [vmem:[#allocation2 + $0x18] sm:$0xff]
    %v41 = vld [vmem:[#allocation2 + $0x20] sm:$0xf]
    %v42 = vld [vmem:[#allocation2 + $0x24] sm:$0xff]
    %v43 = vld [vmem:[#allocation2 + $0x2c] sm:$0xf]
    %v44 = vld [vmem:[#allocation2 + $0x30] sm:$0xff]
    %v45 = vld [vmem:[#allocation2 + $0x38] sm:$0xf]
    %v46 = vld [vmem:[#allocation2 + $0x3c] sm:$0xff]
    %v47 = vld [vmem:[#allocation2 + $0x44] sm:$0xf]
    %v48 = vld [vmem:[#allocation2 + $0x48] sm:$0xff]
    %v49 = vld [vmem:[#allocation2 + $0x50] sm:$0xf]
    %v50 = vld [vmem:[#allocation2 + $0x54] sm:$0xff]
    %v51 = vld [vmem:[#allocation2 + $0x5c] sm:$0xf]
    %v52 = vld [vmem:[#allocation2 + $0x60] sm:$0xff]
    %v53 = vld [vmem:[#allocation2 + $0x68] sm:$0xf]
    %v54 = vld [vmem:[#allocation2 + $0x6c] sm:$0xff]
    %v55 = vld [vmem:[#allocation2 + $0x74] sm:$0xf]
    %v56 = vld [vmem:[#allocation2 + $0x78] sm:$0xff]
    %v57 = vld [vmem:[#allocation2 + $0x80] sm:$0xf]
    %v58 = vld [vmem:[#allocation2 + $0x84] sm:$0xff]
    %v59 = vld [vmem:[#allocation2 + $0x8c] sm:$0xf]
    %v60 = vld [vmem:[#allocation2 + $0x90] sm:$0xff]
    %v61 = vld [vmem:[#allocation2 + $0x98] sm:$0xf]
    %v62 = vld [vmem:[#allocation2 + $0x9c] sm:$0xff]
    %v63 = vld [vmem:[#allocation2 + $0xa4] sm:$0xf]
    %v64 = vld [vmem:[#allocation2 + $0xa8] sm:$0xff]
    %v65 = vld [vmem:[#allocation2 + $0xb0] sm:$0xf]
    %v66 = vld [vmem:[#allocation2 + $0xb4] sm:$0xff]
    %v67 = vld [vmem:[#allocation2 + $0xbc] sm:$0xf]
    %v68 = vld [vmem:[#allocation2 + $0xc0] sm:$0xff]
    %v69 = vld [vmem:[#allocation2 + $0xc8] sm:$0xf]
    %v70 = vld [vmem:[#allocation2 + $0xcc] sm:$0xff]
    %v71 = vld [vmem:[#allocation2 + $0xd4] sm:$0xf]
    %v72 = vld [vmem:[#allocation2 + $0xd8] sm:$0xff]
    %v73 = vld [vmem:[#allocation2 + $0xe0] sm:$0xf]
    %v74 = vld [vmem:[#allocation2 + $0xe4] sm:$0xff]
    %v75 = vld [vmem:[#allocation2 + $0xec] sm:$0xf]
    %v76 = vld [vmem:[#allocation2 + $0xf0] sm:$0xff]
    %v77 = vld [vmem:[#allocation2 + $0xf8] sm:$0xf]
    %v78 = vld [vmem:[#allocation2 + $0xfc] sm:$0xff]
    %v79 = vld [vmem:[#allocation2 + $0x104] sm:$0xf]
    %v80 = vld [vmem:[#allocation2 + $0x108] sm:$0xff]
    %v81 = vld [vmem:[#allocation2 + $0x110] sm:$0xf]
    %v82 = vld [vmem:[#allocation2 + $0x114] sm:$0xff]
    %v83 = vld [vmem:[#allocation2 + $0x11c] sm:$0xf]
    %v84 = vld [vmem:[#allocation2 + $0x120] sm:$0xff]
    %v85 = vld [vmem:[#allocation2 + $0x128] sm:$0xf]
    %v86 = vld [vmem:[#allocation2 + $0x12c] sm:$0xff]
    %v87 = vld [vmem:[#allocation2 + $0x134] sm:$0xf]
    %v88 = vld [vmem:[#allocation2 + $0x138] sm:$0xff]
    %v89 = vld [vmem:[#allocation2 + $0x140] sm:$0xf]
    %v90 = vld [vmem:[#allocation2 + $0x144] sm:$0xff]
    %v91 = vld [vmem:[#allocation2 + $0x14c] sm:$0xf]
    %v92 = vld [vmem:[#allocation2 + $0x150] sm:$0xff]
    %v93 = vld [vmem:[#allocation2 + $0x158] sm:$0xf]
    %v94 = vld [vmem:[#allocation2 + $0x15c] sm:$0xff]
    %v95 = vld [vmem:[#allocation2 + $0x164] sm:$0xf]
    %v96 = vld [vmem:[#allocation2 + $0x168] sm:$0xff]
    %v97 = vld [vmem:[#allocation2 + $0x170] sm:$0xf]
    %v98 = vld [vmem:[#allocation2 + $0x174] sm:$0xff]
    %v99 = vld [vmem:[#allocation2 + $0x17c] sm:$0xf]
    %v100 = vld [vmem:[#allocation2 + $0x180] sm:$0xff]
    %v101 = vld [vmem:[#allocation2 + $0x188] sm:$0xf]
    %v102 = vld [vmem:[#allocation2 + $0x18c] sm:$0xff]
    %v103 = vld [vmem:[#allocation2 + $0x194] sm:$0xf]
    %v104 = vld [vmem:[#allocation2 + $0x198] sm:$0xff]
    %v105 = vld [vmem:[#allocation2 + $0x1a0] sm:$0xf]
    %v106 = vld [vmem:[#allocation2 + $0x1a4] sm:$0xff]
    %v107 = vld [vmem:[#allocation2 + $0x1ac] sm:$0xf]
    %v108 = vld [vmem:[#allocation2 + $0x1b0] sm:$0xff]
    %v109 = vld [vmem:[#allocation2 + $0x1b8] sm:$0xf]
    %v110 = vld [vmem:[#allocation2 + $0x1bc] sm:$0xff]
    %v111 = vld [vmem:[#allocation2 + $0x1c4] sm:$0xf]
    %v112 = vld [vmem:[#allocation2 + $0x1c8] sm:$0xff]
    %v113 = vld [vmem:[#allocation2 + $0x1d0] sm:$0xf]
    %v114 = vld [vmem:[#allocation2 + $0x1d4] sm:$0xff]
    %v115 = vld [vmem:[#allocation2 + $0x1dc] sm:$0xf]
    %v116 = vld [vmem:[#allocation2 + $0x1e0] sm:$0xff]
    %v117 = vld [vmem:[#allocation2 + $0x1e8] sm:$0xf]
    %v118 = vld [vmem:[#allocation2 + $0x1ec] sm:$0xff]
    %v119 = vld [vmem:[#allocation2 + $0x1f4] sm:$0xf]
    %v120 = vld [vmem:[#allocation2 + $0x1f8] sm:$0xff]
    %v121 = vld [vmem:[#allocation2 + $0x200] sm:$0xf]
    %v122 = vld [vmem:[#allocation2 + $0x204] sm:$0xff]
    %v123 = vld [vmem:[#allocation2 + $0x20c] sm:$0xf]
    %v124 = vld [vmem:[#allocation2 + $0x210] sm:$0xff]
    %v125 = vld [vmem:[#allocation2 + $0x218] sm:$0xf]
    %v126 = vld [vmem:[#allocation2 + $0x21c] sm:$0xff]
    %v127 = vld [vmem:[#allocation2 + $0x224] sm:$0xf]
    %v128 = vld [vmem:[#allocation2 + $0x228] sm:$0xff]
    %v129 = vld [vmem:[#allocation2 + $0x230] sm:$0xf]
    %v130 = vld [vmem:[#allocation2 + $0x234] sm:$0xff]
    %v131 = vld [vmem:[#allocation2 + $0x23c] sm:$0xf]
    %v132 = vld [vmem:[%s1] sm:$0xf]
    %v133 = vld [vmem:[%s1 + $0x4] sm:$0xf]
    %v134 = vld [vmem:[%s1 + $0x8] sm:$0xf]
    %v135 = vld [vmem:[%s1 + $0xc] sm:$0xf]
    %v136 = vld [vmem:[%s1 + $0x10] sm:$0xf]
    %v137 = vld [vmem:[%s1 + $0x14] sm:$0xf]
    %v138 = vld [vmem:[%s1 + $0x18] sm:$0xf]
    %v139 = vld [vmem:[%s1 + $0x1c] sm:$0xf]
    %v140 = vld [vmem:[%s1 + $0x20] sm:$0xf]
    %v141 = vld [vmem:[%s1 + $0x24] sm:$0xf]
    %v142 = vld [vmem:[%s1 + $0x28] sm:$0xf]
    %v143 = vld [vmem:[%s1 + $0x2c] sm:$0xf]
    %v144 = vld [vmem:[%s1 + $0x30] sm:$0xf]
    %v145 = vld [vmem:[%s1 + $0x34] sm:$0xf]
    %v146 = vld [vmem:[%s1 + $0x38] sm:$0xf]
    %v147 = vld [vmem:[%s1 + $0x3c] sm:$0xf]
    %v148 = vld [vmem:[%s1 + $0x40] sm:$0xf]
    %v149 = vld [vmem:[%s1 + $0x44] sm:$0xf]
    %v150 = vld [vmem:[%s1 + $0x48] sm:$0xf]
    %v151 = vld [vmem:[%s1 + $0x4c] sm:$0xf]
    %v152 = vld [vmem:[%s1 + $0x50] sm:$0xf]
    %v153 = vld [vmem:[%s1 + $0x54] sm:$0xf]
    %v154 = vld [vmem:[%s1 + $0x58] sm:$0xf]
    %v155 = vld [vmem:[%s1 + $0x5c] sm:$0xf]
    %v156 = vld [vmem:[%s1 + $0x60] sm:$0xf]
    %v157 = vld [vmem:[%s1 + $0x64] sm:$0xf]
    %v158 = vld [vmem:[%s1 + $0x68] sm:$0xf]
    %v159 = vld [vmem:[%s1 + $0x6c] sm:$0xf]
    %v160 = vld [vmem:[%s1 + $0x70] sm:$0xf]
    %v161 = vld [vmem:[%s1 + $0x74] sm:$0xf]
    %v162 = vld [vmem:[%s1 + $0x78] sm:$0xf]
    %v163 = vld [vmem:[%s1 + $0x7c] sm:$0xf]
    %v164 = vld [vmem:[%s1 + $0x80] sm:$0xf]
    %v165 = vld [vmem:[%s1 + $0x84] sm:$0xf]
    %v166 = vld [vmem:[%s1 + $0x88] sm:$0xf]
    %v167 = vld [vmem:[%s1 + $0x8c] sm:$0xf]
    %v168 = vld [vmem:[%s1 + $0x90] sm:$0xf]
    %v169 = vld [vmem:[%s1 + $0x94] sm:$0xf]
    %v170 = vld [vmem:[%s1 + $0x98] sm:$0xf]
    %v171 = vld [vmem:[%s1 + $0x9c] sm:$0xf]
    %v172 = vld [vmem:[%s1 + $0xa0] sm:$0xf]
    %v173 = vld [vmem:[%s1 + $0xa4] sm:$0xf]
    %v174 = vld [vmem:[%s1 + $0xa8] sm:$0xf]
    %v175 = vld [vmem:[%s1 + $0xac] sm:$0xf]
    %v176 = vld [vmem:[%s1 + $0xb0] sm:$0xf]
    %v177 = vld [vmem:[%s1 + $0xb4] sm:$0xf]
    %v178 = vld [vmem:[%s1 + $0xb8] sm:$0xf]
    %v179 = vld [vmem:[%s1 + $0xbc] sm:$0xf]
    %v180 = vld [vmem:[%s2] sm:$0x1]
    %v182 = vperm.slane %v180, 0
    %v280 = vunpack.c.l.b16 %v36
    %v281 = vunpack.c.h.b16 %v36
    %v282 = vunpack.c.l.b16 %v37
    %v283 = vunpack.c.l.b16 %v38
    %v284 = vunpack.c.h.b16 %v38
    %v285 = vunpack.c.l.b16 %v39
    %v286 = vunpack.c.l.b16 %v40
    %v287 = vunpack.c.h.b16 %v40
    %v288 = vunpack.c.l.b16 %v41
    %v289 = vunpack.c.l.b16 %v42
    %v290 = vunpack.c.h.b16 %v42
    %v291 = vunpack.c.l.b16 %v43
    %v292 = vunpack.c.l.b16 %v44
    %v293 = vunpack.c.h.b16 %v44
    %v294 = vunpack.c.l.b16 %v45
    %v295 = vunpack.c.l.b16 %v46
    %v296 = vunpack.c.h.b16 %v46
    %v297 = vunpack.c.l.b16 %v47
    %v298 = vunpack.c.l.b16 %v48
    %v299 = vunpack.c.h.b16 %v48
    %v300 = vunpack.c.l.b16 %v49
    %v301 = vunpack.c.l.b16 %v50
    %v302 = vunpack.c.h.b16 %v50
    %v303 = vunpack.c.l.b16 %v51
    %v304 = vunpack.c.l.b16 %v52
    %v305 = vunpack.c.h.b16 %v52
    %v306 = vunpack.c.l.b16 %v53
    %v307 = vunpack.c.l.b16 %v54
    %v308 = vunpack.c.h.b16 %v54
    %v309 = vunpack.c.l.b16 %v55
    %v310 = vunpack.c.l.b16 %v56
    %v311 = vunpack.c.h.b16 %v56
    %v312 = vunpack.c.l.b16 %v57
    %v313 = vunpack.c.l.b16 %v58
    %v314 = vunpack.c.h.b16 %v58
    %v315 = vunpack.c.l.b16 %v59
    %v316 = vunpack.c.l.b16 %v60
    %v317 = vunpack.c.h.b16 %v60
    %v318 = vunpack.c.l.b16 %v61
    %v319 = vunpack.c.l.b16 %v62
    %v320 = vunpack.c.h.b16 %v62
    %v321 = vunpack.c.l.b16 %v63
    %v322 = vunpack.c.l.b16 %v64
    %v323 = vunpack.c.h.b16 %v64
    %v324 = vunpack.c.l.b16 %v65
    %v325 = vunpack.c.l.b16 %v66
    %v326 = vunpack.c.h.b16 %v66
    %v327 = vunpack.c.l.b16 %v67
    %v328 = vunpack.c.l.b16 %v68
    %v329 = vunpack.c.h.b16 %v68
    %v330 = vunpack.c.l.b16 %v69
    %v331 = vunpack.c.l.b16 %v70
    %v332 = vunpack.c.h.b16 %v70
    %v333 = vunpack.c.l.b16 %v71
    %v334 = vunpack.c.l.b16 %v72
    %v335 = vunpack.c.h.b16 %v72
    %v336 = vunpack.c.l.b16 %v73
    %v337 = vunpack.c.l.b16 %v74
    %v338 = vunpack.c.h.b16 %v74
    %v339 = vunpack.c.l.b16 %v75
    %v340 = vunpack.c.l.b16 %v76
    %v341 = vunpack.c.h.b16 %v76
    %v342 = vunpack.c.l.b16 %v77
    %v343 = vunpack.c.l.b16 %v78
    %v344 = vunpack.c.h.b16 %v78
    %v345 = vunpack.c.l.b16 %v79
    %v346 = vunpack.c.l.b16 %v80
    %v347 = vunpack.c.h.b16 %v80
    %v348 = vunpack.c.l.b16 %v81
    %v349 = vunpack.c.l.b16 %v82
    %v350 = vunpack.c.h.b16 %v82
    %v351 = vunpack.c.l.b16 %v83
    %v352 = vunpack.c.l.b16 %v84
    %v353 = vunpack.c.h.b16 %v84
    %v354 = vunpack.c.l.b16 %v85
    %v355 = vunpack.c.l.b16 %v86
    %v356 = vunpack.c.h.b16 %v86
    %v357 = vunpack.c.l.b16 %v87
    %v358 = vunpack.c.l.b16 %v88
    %v359 = vunpack.c.h.b16 %v88
    %v360 = vunpack.c.l.b16 %v89
    %v361 = vunpack.c.l.b16 %v90
    %v362 = vunpack.c.h.b16 %v90
    %v363 = vunpack.c.l.b16 %v91
    %v364 = vunpack.c.l.b16 %v92
    %v365 = vunpack.c.h.b16 %v92
    %v366 = vunpack.c.l.b16 %v93
    %v367 = vunpack.c.l.b16 %v94
    %v368 = vunpack.c.h.b16 %v94
    %v369 = vunpack.c.l.b16 %v95
    %v370 = vunpack.c.l.b16 %v96
    %v371 = vunpack.c.h.b16 %v96
    %v372 = vunpack.c.l.b16 %v97
    %v373 = vunpack.c.l.b16 %v98
    %v374 = vunpack.c.h.b16 %v98
    %v375 = vunpack.c.l.b16 %v99
    %v376 = vunpack.c.l.b16 %v100
    %v377 = vunpack.c.h.b16 %v100
    %v378 = vunpack.c.l.b16 %v101
    %v379 = vunpack.c.l.b16 %v102
    %v380 = vunpack.c.h.b16 %v102
    %v381 = vunpack.c.l.b16 %v103
    %v382 = vunpack.c.l.b16 %v104
    %v383 = vunpack.c.h.b16 %v104
    %v384 = vunpack.c.l.b16 %v105
    %v385 = vunpack.c.l.b16 %v106
    %v386 = vunpack.c.h.b16 %v106
    %v387 = vunpack.c.l.b16 %v107
    %v388 = vunpack.c.l.b16 %v108
    %v389 = vunpack.c.h.b16 %v108
    %v390 = vunpack.c.l.b16 %v109
    %v391 = vunpack.c.l.b16 %v110
    %v392 = vunpack.c.h.b16 %v110
    %v393 = vunpack.c.l.b16 %v111
    %v394 = vunpack.c.l.b16 %v112
    %v395 = vunpack.c.h.b16 %v112
    %v396 = vunpack.c.l.b16 %v113
    %v397 = vunpack.c.l.b16 %v114
    %v398 = vunpack.c.h.b16 %v114
    %v399 = vunpack.c.l.b16 %v115
    %v400 = vunpack.c.l.b16 %v116
    %v401 = vunpack.c.h.b16 %v116
    %v402 = vunpack.c.l.b16 %v117
    %v403 = vunpack.c.l.b16 %v118
    %v404 = vunpack.c.h.b16 %v118
    %v405 = vunpack.c.l.b16 %v119
    %v406 = vunpack.c.l.b16 %v120
    %v407 = vunpack.c.h.b16 %v120
    %v408 = vunpack.c.l.b16 %v121
    %v409 = vunpack.c.l.b16 %v122
    %v410 = vunpack.c.h.b16 %v122
    %v411 = vunpack.c.l.b16 %v123
    %v412 = vunpack.c.l.b16 %v124
    %v413 = vunpack.c.h.b16 %v124
    %v414 = vunpack.c.l.b16 %v125
    %v415 = vunpack.c.l.b16 %v126
    %v416 = vunpack.c.h.b16 %v126
    %v417 = vunpack.c.l.b16 %v127
    %v418 = vunpack.c.l.b16 %v128
    %v419 = vunpack.c.h.b16 %v128
    %v420 = vunpack.c.l.b16 %v129
    %v421 = vunpack.c.l.b16 %v130
    %v422 = vunpack.c.h.b16 %v130
    %v423 = vunpack.c.l.b16 %v131
    %v424 = vpack.c.b16 %v283, %v280
    %v425 = vpack.c.b16 %v284, %v281
    %v426 = vpack.c.b16 %v285, %v282
    %v427 = vpack.c.b16 %v289, %v286
    %v428 = vpack.c.b16 %v290, %v287
    %v429 = vpack.c.b16 %v291, %v288
    %v430 = vpack.c.b16 %v295, %v292
    %v431 = vpack.c.b16 %v296, %v293
    %v432 = vpack.c.b16 %v297, %v294
    %v433 = vpack.c.b16 %v301, %v298
    %v434 = vpack.c.b16 %v302, %v299
    %v435 = vpack.c.b16 %v303, %v300
    %v436 = vpack.c.b16 %v307, %v304
    %v437 = vpack.c.b16 %v308, %v305
    %v438 = vpack.c.b16 %v309, %v306
    %v439 = vpack.c.b16 %v313, %v310
    %v440 = vpack.c.b16 %v314, %v311
    %v441 = vpack.c.b16 %v315, %v312
    %v442 = vpack.c.b16 %v319, %v316
    %v443 = vpack.c.b16 %v320, %v317
    %v444 = vpack.c.b16 %v321, %v318
    %v445 = vpack.c.b16 %v325, %v322
    %v446 = vpack.c.b16 %v326, %v323
    %v447 = vpack.c.b16 %v327, %v324
    %v448 = vpack.c.b16 %v331, %v328
    %v449 = vpack.c.b16 %v332, %v329
    %v450 = vpack.c.b16 %v333, %v330
    %v451 = vpack.c.b16 %v337, %v334
    %v452 = vpack.c.b16 %v338, %v335
    %v453 = vpack.c.b16 %v339, %v336
    %v454 = vpack.c.b16 %v343, %v340
    %v455 = vpack.c.b16 %v344, %v341
    %v456 = vpack.c.b16 %v345, %v342
    %v457 = vpack.c.b16 %v349, %v346
    %v458 = vpack.c.b16 %v350, %v347
    %v459 = vpack.c.b16 %v351, %v348
    %v460 = vpack.c.b16 %v355, %v352
    %v461 = vpack.c.b16 %v356, %v353
    %v462 = vpack.c.b16 %v357, %v354
    %v463 = vpack.c.b16 %v361, %v358
    %v464 = vpack.c.b16 %v362, %v359
    %v465 = vpack.c.b16 %v363, %v360
    %v466 = vpack.c.b16 %v367, %v364
    %v467 = vpack.c.b16 %v368, %v365
    %v468 = vpack.c.b16 %v369, %v366
    %v469 = vpack.c.b16 %v373, %v370
    %v470 = vpack.c.b16 %v374, %v371
    %v471 = vpack.c.b16 %v375, %v372
    %v472 = vpack.c.b16 %v379, %v376
    %v473 = vpack.c.b16 %v380, %v377
    %v474 = vpack.c.b16 %v381, %v378
    %v475 = vpack.c.b16 %v385, %v382
    %v476 = vpack.c.b16 %v386, %v383
    %v477 = vpack.c.b16 %v387, %v384
    %v478 = vpack.c.b16 %v391, %v388
    %v479 = vpack.c.b16 %v392, %v389
    %v480 = vpack.c.b16 %v393, %v390
    %v481 = vpack.c.b16 %v397, %v394
    %v482 = vpack.c.b16 %v398, %v395
    %v483 = vpack.c.b16 %v399, %v396
    %v484 = vpack.c.b16 %v403, %v400
    %v485 = vpack.c.b16 %v404, %v401
    %v486 = vpack.c.b16 %v405, %v402
    %v487 = vpack.c.b16 %v409, %v406
    %v488 = vpack.c.b16 %v410, %v407
    %v489 = vpack.c.b16 %v411, %v408
    %v490 = vpack.c.b16 %v415, %v412
    %v491 = vpack.c.b16 %v416, %v413
    %v492 = vpack.c.b16 %v417, %v414
    %v493 = vpack.c.b16 %v421, %v418
    %v494 = vpack.c.b16 %v422, %v419
    %v495 = vpack.c.b16 %v423, %v420
    %v616 = vunpack.c.l.b16 %v132
    %v617 = vunpack.c.l.b16 %v133
    %v618 = vunpack.c.l.b16 %v134
    %v619 = vunpack.c.l.b16 %v135
    %v620 = vunpack.c.l.b16 %v136
    %v621 = vunpack.c.l.b16 %v137
    %v622 = vunpack.c.l.b16 %v138
    %v623 = vunpack.c.l.b16 %v139
    %v624 = vunpack.c.l.b16 %v140
    %v625 = vunpack.c.l.b16 %v141
    %v626 = vunpack.c.l.b16 %v142
    %v627 = vunpack.c.l.b16 %v143
    %v628 = vunpack.c.l.b16 %v144
    %v629 = vunpack.c.l.b16 %v145
    %v630 = vunpack.c.l.b16 %v146
    %v631 = vunpack.c.l.b16 %v147
    %v632 = vunpack.c.l.b16 %v148
    %v633 = vunpack.c.l.b16 %v149
    %v634 = vunpack.c.l.b16 %v150
    %v635 = vunpack.c.l.b16 %v151
    %v636 = vunpack.c.l.b16 %v152
    %v637 = vunpack.c.l.b16 %v153
    %v638 = vunpack.c.l.b16 %v154
    %v639 = vunpack.c.l.b16 %v155
    %v640 = vunpack.c.l.b16 %v156
    %v641 = vunpack.c.l.b16 %v157
    %v642 = vunpack.c.l.b16 %v158
    %v643 = vunpack.c.l.b16 %v159
    %v644 = vunpack.c.l.b16 %v160
    %v645 = vunpack.c.l.b16 %v161
    %v646 = vunpack.c.l.b16 %v162
    %v647 = vunpack.c.l.b16 %v163
    %v648 = vunpack.c.l.b16 %v164
    %v649 = vunpack.c.l.b16 %v165
    %v650 = vunpack.c.l.b16 %v166
    %v651 = vunpack.c.l.b16 %v167
    %v652 = vunpack.c.l.b16 %v168
    %v653 = vunpack.c.l.b16 %v169
    %v654 = vunpack.c.l.b16 %v170
    %v655 = vunpack.c.l.b16 %v171
    %v656 = vunpack.c.l.b16 %v172
    %v657 = vunpack.c.l.b16 %v173
    %v658 = vunpack.c.l.b16 %v174
    %v659 = vunpack.c.l.b16 %v175
    %v660 = vunpack.c.l.b16 %v176
    %v661 = vunpack.c.l.b16 %v177
    %v662 = vunpack.c.l.b16 %v178
    %v663 = vunpack.c.l.b16 %v179
    %v664 = vpack.c.b16 %v617, %v616
    %v665 = vpack.c.b16 %v619, %v618
    %v666 = vpack.c.b16 %v621, %v620
    %v667 = vpack.c.b16 %v623, %v622
    %v668 = vpack.c.b16 %v625, %v624
    %v669 = vpack.c.b16 %v627, %v626
    %v670 = vpack.c.b16 %v629, %v628
    %v671 = vpack.c.b16 %v631, %v630
    %v672 = vpack.c.b16 %v633, %v632
    %v673 = vpack.c.b16 %v635, %v634
    %v674 = vpack.c.b16 %v637, %v636
    %v675 = vpack.c.b16 %v639, %v638
    %v676 = vpack.c.b16 %v641, %v640
    %v677 = vpack.c.b16 %v643, %v642
    %v678 = vpack.c.b16 %v645, %v644
    %v679 = vpack.c.b16 %v647, %v646
    %v680 = vpack.c.b16 %v649, %v648
    %v681 = vpack.c.b16 %v651, %v650
    %v682 = vpack.c.b16 %v653, %v652
    %v683 = vpack.c.b16 %v655, %v654
    %v684 = vpack.c.b16 %v657, %v656
    %v685 = vpack.c.b16 %v659, %v658
    %v686 = vpack.c.b16 %v661, %v660
    %v687 = vpack.c.b16 %v663, %v662
    %712 = vmatpush.bf16.msra.mxu0 %v671
    %713 = vmatpush.bf16.msra.mxu0 %v670
    %714 = vmatpush.bf16.msra.mxu0 %v669
    %715 = vmatpush.bf16.msra.mxu0 %v668
    %716 = vmatpush.bf16.msra.mxu0 %v667
    %717 = vmatpush.bf16.msra.mxu0 %v666
    %718 = vmatpush.bf16.msra.mxu0 %v665
    %719 = vmatpush.bf16.msra.mxu0 %v664
    %720 = vmatmul.bf16.gmra.mxu0 %v424
    %v721 = vpop.f32.mrf.mxu0
    %v722 = vadd.f32 %v182, %v721
    %v723 = vpop.f32.mrf.mxu0
    %v724 = vadd.f32 %v182, %v723
    %725 = vmatmul.bf16.gmra.mxu0 %v427
    %v726 = vpop.f32.mrf.mxu0
    %v727 = vadd.f32 %v182, %v726
    %v728 = vpop.f32.mrf.mxu0
    %v729 = vadd.f32 %v182, %v728
    %730 = vmatmul.bf16.gmra.mxu0 %v430
    %v731 = vpop.f32.mrf.mxu0
    %v732 = vadd.f32 %v182, %v731
    %v733 = vpop.f32.mrf.mxu0
    %v734 = vadd.f32 %v182, %v733
    %735 = vmatmul.bf16.gmra.mxu0 %v433
    %v736 = vpop.f32.mrf.mxu0
    %v737 = vadd.f32 %v182, %v736
    %v738 = vpop.f32.mrf.mxu0
    %v739 = vadd.f32 %v182, %v738
    %740 = vmatmul.bf16.gmra.mxu0 %v436
    %v741 = vpop.f32.mrf.mxu0
    %v742 = vadd.f32 %v182, %v741
    %v743 = vpop.f32.mrf.mxu0
    %v744 = vadd.f32 %v182, %v743
    %745 = vmatmul.bf16.gmra.mxu0 %v439
    %v746 = vpop.f32.mrf.mxu0
    %v747 = vadd.f32 %v182, %v746
    %v748 = vpop.f32.mrf.mxu0
    %v749 = vadd.f32 %v182, %v748
    %750 = vmatmul.bf16.gmra.mxu0 %v442
    %v751 = vpop.f32.mrf.mxu0
    %v752 = vadd.f32 %v182, %v751
    %v753 = vpop.f32.mrf.mxu0
    %v754 = vadd.f32 %v182, %v753
    %755 = vmatmul.bf16.gmra.mxu0 %v445
    %v756 = vpop.f32.mrf.mxu0
    %v757 = vadd.f32 %v182, %v756
    %v758 = vpop.f32.mrf.mxu0
    %v759 = vadd.f32 %v182, %v758
    %760 = vmatmul.bf16.gmra.mxu0 %v448
    %v761 = vpop.f32.mrf.mxu0
    %v762 = vadd.f32 %v182, %v761
    %v763 = vpop.f32.mrf.mxu0
    %v764 = vadd.f32 %v182, %v763
    %765 = vmatmul.bf16.gmra.mxu0 %v451
    %v766 = vpop.f32.mrf.mxu0
    %v767 = vadd.f32 %v182, %v766
    %v768 = vpop.f32.mrf.mxu0
    %v769 = vadd.f32 %v182, %v768
    %770 = vmatmul.bf16.gmra.mxu0 %v454
    %v771 = vpop.f32.mrf.mxu0
    %v772 = vadd.f32 %v182, %v771
    %v773 = vpop.f32.mrf.mxu0
    %v774 = vadd.f32 %v182, %v773
    %775 = vmatmul.bf16.gmra.mxu0 %v457
    %v776 = vpop.f32.mrf.mxu0
    %v777 = vadd.f32 %v182, %v776
    %v778 = vpop.f32.mrf.mxu0
    %v779 = vadd.f32 %v182, %v778
    %780 = vmatmul.bf16.gmra.mxu0 %v460
    %v781 = vpop.f32.mrf.mxu0
    %v782 = vadd.f32 %v182, %v781
    %v783 = vpop.f32.mrf.mxu0
    %v784 = vadd.f32 %v182, %v783
    %785 = vmatmul.bf16.gmra.mxu0 %v463
    %v786 = vpop.f32.mrf.mxu0
    %v787 = vadd.f32 %v182, %v786
    %v788 = vpop.f32.mrf.mxu0
    %v789 = vadd.f32 %v182, %v788
    %790 = vmatmul.bf16.gmra.mxu0 %v466
    %v791 = vpop.f32.mrf.mxu0
    %v792 = vadd.f32 %v182, %v791
    %v793 = vpop.f32.mrf.mxu0
    %v794 = vadd.f32 %v182, %v793
    %795 = vmatmul.bf16.gmra.mxu0 %v469
    %v796 = vpop.f32.mrf.mxu0
    %v797 = vadd.f32 %v182, %v796
    %v798 = vpop.f32.mrf.mxu0
    %v799 = vadd.f32 %v182, %v798
    %800 = vmatmul.bf16.gmra.mxu0 %v472
    %v801 = vpop.f32.mrf.mxu0
    %v802 = vadd.f32 %v182, %v801
    %v803 = vpop.f32.mrf.mxu0
    %v804 = vadd.f32 %v182, %v803
    %805 = vmatmul.bf16.gmra.mxu0 %v475
    %v806 = vpop.f32.mrf.mxu0
    %v807 = vadd.f32 %v182, %v806
    %v808 = vpop.f32.mrf.mxu0
    %v809 = vadd.f32 %v182, %v808
    %810 = vmatmul.bf16.gmra.mxu0 %v478
    %v811 = vpop.f32.mrf.mxu0
    %v812 = vadd.f32 %v182, %v811
    %v813 = vpop.f32.mrf.mxu0
    %v814 = vadd.f32 %v182, %v813
    %815 = vmatmul.bf16.gmra.mxu0 %v481
    %v816 = vpop.f32.mrf.mxu0
    %v817 = vadd.f32 %v182, %v816
    %v818 = vpop.f32.mrf.mxu0
    %v819 = vadd.f32 %v182, %v818
    %820 = vmatmul.bf16.gmra.mxu0 %v484
    %v821 = vpop.f32.mrf.mxu0
    %v822 = vadd.f32 %v182, %v821
    %v823 = vpop.f32.mrf.mxu0
    %v824 = vadd.f32 %v182, %v823
    %825 = vmatmul.bf16.gmra.mxu0 %v487
    %v826 = vpop.f32.mrf.mxu0
    %v827 = vadd.f32 %v182, %v826
    %v828 = vpop.f32.mrf.mxu0
    %v829 = vadd.f32 %v182, %v828
    %830 = vmatmul.bf16.gmra.mxu0 %v490
    %v831 = vpop.f32.mrf.mxu0
    %v832 = vadd.f32 %v182, %v831
    %v833 = vpop.f32.mrf.mxu0
    %v834 = vadd.f32 %v182, %v833
    %835 = vmatmul.bf16.gmra.mxu0 %v493
    %v836 = vpop.f32.mrf.mxu0
    %v837 = vadd.f32 %v182, %v836
    %v838 = vpop.f32.mrf.mxu0
    %v839 = vadd.f32 %v182, %v838
    %840 = vdwg.mxu0
    %841 = vmatpush.bf16.msra.mxu0 %v679
    %842 = vmatpush.bf16.msra.mxu0 %v678
    %843 = vmatpush.bf16.msra.mxu0 %v677
    %844 = vmatpush.bf16.msra.mxu0 %v676
    %845 = vmatpush.bf16.msra.mxu0 %v675
    %846 = vmatpush.bf16.msra.mxu0 %v674
    %847 = vmatpush.bf16.msra.mxu0 %v673
    %848 = vmatpush.bf16.msra.mxu0 %v672
    %849 = vmatmul.bf16.gmra.mxu0 %v425
    %v850 = vpop.f32.mrf.mxu0
    %v851 = vadd.f32 %v722, %v850
    %v852 = vpop.f32.mrf.mxu0
    %v853 = vadd.f32 %v724, %v852
    %854 = vmatmul.bf16.gmra.mxu0 %v428
    %v855 = vpop.f32.mrf.mxu0
    %v856 = vadd.f32 %v727, %v855
    %v857 = vpop.f32.mrf.mxu0
    %v858 = vadd.f32 %v729, %v857
    %859 = vmatmul.bf16.gmra.mxu0 %v431
    %v860 = vpop.f32.mrf.mxu0
    %v861 = vadd.f32 %v732, %v860
    %v862 = vpop.f32.mrf.mxu0
    %v863 = vadd.f32 %v734, %v862
    %864 = vmatmul.bf16.gmra.mxu0 %v434
    %v865 = vpop.f32.mrf.mxu0
    %v866 = vadd.f32 %v737, %v865
    %v867 = vpop.f32.mrf.mxu0
    %v868 = vadd.f32 %v739, %v867
    %869 = vmatmul.bf16.gmra.mxu0 %v437
    %v870 = vpop.f32.mrf.mxu0
    %v871 = vadd.f32 %v742, %v870
    %v872 = vpop.f32.mrf.mxu0
    %v873 = vadd.f32 %v744, %v872
    %874 = vmatmul.bf16.gmra.mxu0 %v440
    %v875 = vpop.f32.mrf.mxu0
    %v876 = vadd.f32 %v747, %v875
    %v877 = vpop.f32.mrf.mxu0
    %v878 = vadd.f32 %v749, %v877
    %879 = vmatmul.bf16.gmra.mxu0 %v443
    %v880 = vpop.f32.mrf.mxu0
    %v881 = vadd.f32 %v752, %v880
    %v882 = vpop.f32.mrf.mxu0
    %v883 = vadd.f32 %v754, %v882
    %884 = vmatmul.bf16.gmra.mxu0 %v446
    %v885 = vpop.f32.mrf.mxu0
    %v886 = vadd.f32 %v757, %v885
    %v887 = vpop.f32.mrf.mxu0
    %v888 = vadd.f32 %v759, %v887
    %889 = vmatmul.bf16.gmra.mxu0 %v449
    %v890 = vpop.f32.mrf.mxu0
    %v891 = vadd.f32 %v762, %v890
    %v892 = vpop.f32.mrf.mxu0
    %v893 = vadd.f32 %v764, %v892
    %894 = vmatmul.bf16.gmra.mxu0 %v452
    %v895 = vpop.f32.mrf.mxu0
    %v896 = vadd.f32 %v767, %v895
    %v897 = vpop.f32.mrf.mxu0
    %v898 = vadd.f32 %v769, %v897
    %899 = vmatmul.bf16.gmra.mxu0 %v455
    %v900 = vpop.f32.mrf.mxu0
    %v901 = vadd.f32 %v772, %v900
    %v902 = vpop.f32.mrf.mxu0
    %v903 = vadd.f32 %v774, %v902
    %904 = vmatmul.bf16.gmra.mxu0 %v458
    %v905 = vpop.f32.mrf.mxu0
    %v906 = vadd.f32 %v777, %v905
    %v907 = vpop.f32.mrf.mxu0
    %v908 = vadd.f32 %v779, %v907
    %909 = vmatmul.bf16.gmra.mxu0 %v461
    %v910 = vpop.f32.mrf.mxu0
    %v911 = vadd.f32 %v782, %v910
    %v912 = vpop.f32.mrf.mxu0
    %v913 = vadd.f32 %v784, %v912
    %914 = vmatmul.bf16.gmra.mxu0 %v464
    %v915 = vpop.f32.mrf.mxu0
    %v916 = vadd.f32 %v787, %v915
    %v917 = vpop.f32.mrf.mxu0
    %v918 = vadd.f32 %v789, %v917
    %919 = vmatmul.bf16.gmra.mxu0 %v467
    %v920 = vpop.f32.mrf.mxu0
    %v921 = vadd.f32 %v792, %v920
    %v922 = vpop.f32.mrf.mxu0
    %v923 = vadd.f32 %v794, %v922
    %924 = vmatmul.bf16.gmra.mxu0 %v470
    %v925 = vpop.f32.mrf.mxu0
    %v926 = vadd.f32 %v797, %v925
    %v927 = vpop.f32.mrf.mxu0
    %v928 = vadd.f32 %v799, %v927
    %929 = vmatmul.bf16.gmra.mxu0 %v473
    %v930 = vpop.f32.mrf.mxu0
    %v931 = vadd.f32 %v802, %v930
    %v932 = vpop.f32.mrf.mxu0
    %v933 = vadd.f32 %v804, %v932
    %934 = vmatmul.bf16.gmra.mxu0 %v476
    %v935 = vpop.f32.mrf.mxu0
    %v936 = vadd.f32 %v807, %v935
    %v937 = vpop.f32.mrf.mxu0
    %v938 = vadd.f32 %v809, %v937
    %939 = vmatmul.bf16.gmra.mxu0 %v479
    %v940 = vpop.f32.mrf.mxu0
    %v941 = vadd.f32 %v812, %v940
    %v942 = vpop.f32.mrf.mxu0
    %v943 = vadd.f32 %v814, %v942
    %944 = vmatmul.bf16.gmra.mxu0 %v482
    %v945 = vpop.f32.mrf.mxu0
    %v946 = vadd.f32 %v817, %v945
    %v947 = vpop.f32.mrf.mxu0
    %v948 = vadd.f32 %v819, %v947
    %949 = vmatmul.bf16.gmra.mxu0 %v485
    %v950 = vpop.f32.mrf.mxu0
    %v951 = vadd.f32 %v822, %v950
    %v952 = vpop.f32.mrf.mxu0
    %v953 = vadd.f32 %v824, %v952
    %954 = vmatmul.bf16.gmra.mxu0 %v488
    %v955 = vpop.f32.mrf.mxu0
    %v956 = vadd.f32 %v827, %v955
    %v957 = vpop.f32.mrf.mxu0
    %v958 = vadd.f32 %v829, %v957
    %959 = vmatmul.bf16.gmra.mxu0 %v491
    %v960 = vpop.f32.mrf.mxu0
    %v961 = vadd.f32 %v832, %v960
    %v962 = vpop.f32.mrf.mxu0
    %v963 = vadd.f32 %v834, %v962
    %964 = vmatmul.bf16.gmra.mxu0 %v494
    %v965 = vpop.f32.mrf.mxu0
    %v966 = vadd.f32 %v837, %v965
    %v967 = vpop.f32.mrf.mxu0
    %v968 = vadd.f32 %v839, %v967
    %969 = vdwg.mxu0
    %970 = vmatpush.bf16.msra.mxu0 %v687
    %971 = vmatpush.bf16.msra.mxu0 %v686
    %972 = vmatpush.bf16.msra.mxu0 %v685
    %973 = vmatpush.bf16.msra.mxu0 %v684
    %974 = vmatpush.bf16.msra.mxu0 %v683
    %975 = vmatpush.bf16.msra.mxu0 %v682
    %976 = vmatpush.bf16.msra.mxu0 %v681
    %977 = vmatpush.bf16.msra.mxu0 %v680
    %978 = vmatmul.bf16.gmra.mxu0 %v426
    %v979 = vpop.f32.mrf.mxu0
    %v980 = vadd.f32 %v851, %v979
    %v981 = vpop.f32.mrf.mxu0
    %v982 = vadd.f32 %v853, %v981
    %983 = vmatmul.bf16.gmra.mxu0 %v429
    %v984 = vpop.f32.mrf.mxu0
    %v985 = vadd.f32 %v856, %v984
    %v986 = vpop.f32.mrf.mxu0
    %v987 = vadd.f32 %v858, %v986
    %988 = vmatmul.bf16.gmra.mxu0 %v432
    %v989 = vpop.f32.mrf.mxu0
    %v990 = vadd.f32 %v861, %v989
    %v991 = vpop.f32.mrf.mxu0
    %v992 = vadd.f32 %v863, %v991
    %993 = vmatmul.bf16.gmra.mxu0 %v435
    %v994 = vpop.f32.mrf.mxu0
    %v995 = vadd.f32 %v866, %v994
    %v996 = vpop.f32.mrf.mxu0
    %v997 = vadd.f32 %v868, %v996
    %998 = vmatmul.bf16.gmra.mxu0 %v438
    %v999 = vpop.f32.mrf.mxu0
    %v1000 = vadd.f32 %v871, %v999
    %v1001 = vpop.f32.mrf.mxu0
    %v1002 = vadd.f32 %v873, %v1001
    %1003 = vmatmul.bf16.gmra.mxu0 %v441
    %v1004 = vpop.f32.mrf.mxu0
    %v1005 = vadd.f32 %v876, %v1004
    %v1006 = vpop.f32.mrf.mxu0
    %v1007 = vadd.f32 %v878, %v1006
    %1008 = vmatmul.bf16.gmra.mxu0 %v444
    %v1009 = vpop.f32.mrf.mxu0
    %v1010 = vadd.f32 %v881, %v1009
    %v1011 = vpop.f32.mrf.mxu0
    %v1012 = vadd.f32 %v883, %v1011
    %1013 = vmatmul.bf16.gmra.mxu0 %v447
    %v1014 = vpop.f32.mrf.mxu0
    %v1015 = vadd.f32 %v886, %v1014
    %v1016 = vpop.f32.mrf.mxu0
    %v1017 = vadd.f32 %v888, %v1016
    %1018 = vmatmul.bf16.gmra.mxu0 %v450
    %v1019 = vpop.f32.mrf.mxu0
    %v1020 = vadd.f32 %v891, %v1019
    %v1021 = vpop.f32.mrf.mxu0
    %v1022 = vadd.f32 %v893, %v1021
    %1023 = vmatmul.bf16.gmra.mxu0 %v453
    %v1024 = vpop.f32.mrf.mxu0
    %v1025 = vadd.f32 %v896, %v1024
    %v1026 = vpop.f32.mrf.mxu0
    %v1027 = vadd.f32 %v898, %v1026
    %1028 = vmatmul.bf16.gmra.mxu0 %v456
    %v1029 = vpop.f32.mrf.mxu0
    %v1030 = vadd.f32 %v901, %v1029
    %v1031 = vpop.f32.mrf.mxu0
    %v1032 = vadd.f32 %v903, %v1031
    %1033 = vmatmul.bf16.gmra.mxu0 %v459
    %v1034 = vpop.f32.mrf.mxu0
    %v1035 = vadd.f32 %v906, %v1034
    %v1036 = vpop.f32.mrf.mxu0
    %v1037 = vadd.f32 %v908, %v1036
    %1038 = vmatmul.bf16.gmra.mxu0 %v462
    %v1039 = vpop.f32.mrf.mxu0
    %v1040 = vadd.f32 %v911, %v1039
    %v1041 = vpop.f32.mrf.mxu0
    %v1042 = vadd.f32 %v913, %v1041
    %1043 = vmatmul.bf16.gmra.mxu0 %v465
    %v1044 = vpop.f32.mrf.mxu0
    %v1045 = vadd.f32 %v916, %v1044
    %v1046 = vpop.f32.mrf.mxu0
    %v1047 = vadd.f32 %v918, %v1046
    %1048 = vmatmul.bf16.gmra.mxu0 %v468
    %v1049 = vpop.f32.mrf.mxu0
    %v1050 = vadd.f32 %v921, %v1049
    %v1051 = vpop.f32.mrf.mxu0
    %v1052 = vadd.f32 %v923, %v1051
    %1053 = vmatmul.bf16.gmra.mxu0 %v471
    %v1054 = vpop.f32.mrf.mxu0
    %v1055 = vadd.f32 %v926, %v1054
    %v1056 = vpop.f32.mrf.mxu0
    %v1057 = vadd.f32 %v928, %v1056
    %1058 = vmatmul.bf16.gmra.mxu0 %v474
    %v1059 = vpop.f32.mrf.mxu0
    %v1060 = vadd.f32 %v931, %v1059
    %v1061 = vpop.f32.mrf.mxu0
    %v1062 = vadd.f32 %v933, %v1061
    %1063 = vmatmul.bf16.gmra.mxu0 %v477
    %v1064 = vpop.f32.mrf.mxu0
    %v1065 = vadd.f32 %v936, %v1064
    %v1066 = vpop.f32.mrf.mxu0
    %v1067 = vadd.f32 %v938, %v1066
    %1068 = vmatmul.bf16.gmra.mxu0 %v480
    %v1069 = vpop.f32.mrf.mxu0
    %v1070 = vadd.f32 %v941, %v1069
    %v1071 = vpop.f32.mrf.mxu0
    %v1072 = vadd.f32 %v943, %v1071
    %1073 = vmatmul.bf16.gmra.mxu0 %v483
    %v1074 = vpop.f32.mrf.mxu0
    %v1075 = vadd.f32 %v946, %v1074
    %v1076 = vpop.f32.mrf.mxu0
    %v1077 = vadd.f32 %v948, %v1076
    %1078 = vmatmul.bf16.gmra.mxu0 %v486
    %v1079 = vpop.f32.mrf.mxu0
    %v1080 = vadd.f32 %v951, %v1079
    %v1081 = vpop.f32.mrf.mxu0
    %v1082 = vadd.f32 %v953, %v1081
    %1083 = vmatmul.bf16.gmra.mxu0 %v489
    %v1084 = vpop.f32.mrf.mxu0
    %v1085 = vadd.f32 %v956, %v1084
    %v1086 = vpop.f32.mrf.mxu0
    %v1087 = vadd.f32 %v958, %v1086
    %1088 = vmatmul.bf16.gmra.mxu0 %v492
    %v1089 = vpop.f32.mrf.mxu0
    %v1090 = vadd.f32 %v961, %v1089
    %v1091 = vpop.f32.mrf.mxu0
    %v1092 = vadd.f32 %v963, %v1091
    %1093 = vmatmul.bf16.gmra.mxu0 %v495
    %v1094 = vpop.f32.mrf.mxu0
    %v1095 = vadd.f32 %v966, %v1094
    %v1096 = vpop.f32.mrf.mxu0
    %v1097 = vadd.f32 %v968, %v1096
    %1098 = vdwg.mxu0
    %v1099 = vmax.f32 %v980, 0.0
    %v1100 = vmax.f32 %v982, 0.0
    %v1101 = vmax.f32 %v985, 0.0
    %v1102 = vmax.f32 %v987, 0.0
    %v1103 = vmax.f32 %v990, 0.0
    %v1104 = vmax.f32 %v992, 0.0
    %v1105 = vmax.f32 %v995, 0.0
    %v1106 = vmax.f32 %v997, 0.0
    %v1107 = vmax.f32 %v1000, 0.0
    %v1108 = vmax.f32 %v1002, 0.0
    %v1109 = vmax.f32 %v1005, 0.0
    %v1110 = vmax.f32 %v1007, 0.0
    %v1111 = vmax.f32 %v1010, 0.0
    %v1112 = vmax.f32 %v1012, 0.0
    %v1113 = vmax.f32 %v1015, 0.0
    %v1114 = vmax.f32 %v1017, 0.0
    %v1115 = vmax.f32 %v1020, 0.0
    %v1116 = vmax.f32 %v1022, 0.0
    %v1117 = vmax.f32 %v1025, 0.0
    %v1118 = vmax.f32 %v1027, 0.0
    %v1119 = vmax.f32 %v1030, 0.0
    %v1120 = vmax.f32 %v1032, 0.0
    %v1121 = vmax.f32 %v1035, 0.0
    %v1122 = vmax.f32 %v1037, 0.0
    %v1123 = vmax.f32 %v1040, 0.0
    %v1124 = vmax.f32 %v1042, 0.0
    %v1125 = vmax.f32 %v1045, 0.0
    %v1126 = vmax.f32 %v1047, 0.0
    %v1127 = vmax.f32 %v1050, 0.0
    %v1128 = vmax.f32 %v1052, 0.0
    %v1129 = vmax.f32 %v1055, 0.0
    %v1130 = vmax.f32 %v1057, 0.0
    %v1131 = vmax.f32 %v1060, 0.0
    %v1132 = vmax.f32 %v1062, 0.0
    %v1133 = vmax.f32 %v1065, 0.0
    %v1134 = vmax.f32 %v1067, 0.0
    %v1135 = vmax.f32 %v1070, 0.0
    %v1136 = vmax.f32 %v1072, 0.0
    %v1137 = vmax.f32 %v1075, 0.0
    %v1138 = vmax.f32 %v1077, 0.0
    %v1139 = vmax.f32 %v1080, 0.0
    %v1140 = vmax.f32 %v1082, 0.0
    %v1141 = vmax.f32 %v1085, 0.0
    %v1142 = vmax.f32 %v1087, 0.0
    %v1143 = vmax.f32 %v1090, 0.0
    %v1144 = vmax.f32 %v1092, 0.0
    %v1145 = vmax.f32 %v1095, 0.0
    %v1146 = vmax.f32 %v1097, 0.0
    %v1147 = vpack.c.bf16 %v1100, %v1099
    %v1148 = vpack.c.bf16 %v1102, %v1101
    %v1149 = vpack.c.bf16 %v1104, %v1103
    %v1150 = vpack.c.bf16 %v1106, %v1105
    %v1151 = vpack.c.bf16 %v1108, %v1107
    %v1152 = vpack.c.bf16 %v1110, %v1109
    %v1153 = vpack.c.bf16 %v1112, %v1111
    %v1154 = vpack.c.bf16 %v1114, %v1113
    %v1155 = vpack.c.bf16 %v1116, %v1115
    %v1156 = vpack.c.bf16 %v1118, %v1117
    %v1157 = vpack.c.bf16 %v1120, %v1119
    %v1158 = vpack.c.bf16 %v1122, %v1121
    %v1159 = vpack.c.bf16 %v1124, %v1123
    %v1160 = vpack.c.bf16 %v1126, %v1125
    %v1161 = vpack.c.bf16 %v1128, %v1127
    %v1162 = vpack.c.bf16 %v1130, %v1129
    %v1163 = vpack.c.bf16 %v1132, %v1131
    %v1164 = vpack.c.bf16 %v1134, %v1133
    %v1165 = vpack.c.bf16 %v1136, %v1135
    %v1166 = vpack.c.bf16 %v1138, %v1137
    %v1167 = vpack.c.bf16 %v1140, %v1139
    %v1168 = vpack.c.bf16 %v1142, %v1141
    %v1169 = vpack.c.bf16 %v1144, %v1143
    %v1170 = vpack.c.bf16 %v1146, %v1145
    %v1171 = vld [vmem:[%s3] sm:$0xf]
    %v1172 = vld [vmem:[%s3 + $0x4] sm:$0xf]
    %v1173 = vld [vmem:[%s3 + $0x8] sm:$0xf]
    %v1174 = vld [vmem:[%s3 + $0xc] sm:$0xf]
    %v1175 = vld [vmem:[%s3 + $0x10] sm:$0xf]
    %v1176 = vld [vmem:[%s3 + $0x14] sm:$0xf]
    %v1177 = vld [vmem:[%s3 + $0x18] sm:$0xf]
    %v1178 = vld [vmem:[%s3 + $0x1c] sm:$0xf]
    %v1179 = vld [vmem:[%s3 + $0x20] sm:$0xf]
    %v1180 = vld [vmem:[%s3 + $0x24] sm:$0xf]
    %v1181 = vld [vmem:[%s3 + $0x28] sm:$0xf]
    %v1182 = vld [vmem:[%s3 + $0x2c] sm:$0xf]
    %v1183 = vld [vmem:[%s3 + $0x30] sm:$0xf]
    %v1184 = vld [vmem:[%s3 + $0x34] sm:$0xf]
    %v1185 = vld [vmem:[%s3 + $0x38] sm:$0xf]
    %v1186 = vld [vmem:[%s3 + $0x3c] sm:$0xf]
    %v1203 = vunpack.c.l.b16 %v1171
    %v1204 = vunpack.c.l.b16 %v1172
    %v1205 = vunpack.c.l.b16 %v1173
    %v1206 = vunpack.c.l.b16 %v1174
    %v1207 = vunpack.c.l.b16 %v1175
    %v1208 = vunpack.c.l.b16 %v1176
    %v1209 = vunpack.c.l.b16 %v1177
    %v1210 = vunpack.c.l.b16 %v1178
    %v1211 = vunpack.c.l.b16 %v1179
    %v1212 = vunpack.c.l.b16 %v1180
    %v1213 = vunpack.c.l.b16 %v1181
    %v1214 = vunpack.c.l.b16 %v1182
    %v1215 = vunpack.c.l.b16 %v1183
    %v1216 = vunpack.c.l.b16 %v1184
    %v1217 = vunpack.c.l.b16 %v1185
    %v1218 = vunpack.c.l.b16 %v1186
    %v1219 = vpack.c.b16 %v1204, %v1203
    %v1220 = vpack.c.b16 %v1206, %v1205
    %v1221 = vpack.c.b16 %v1208, %v1207
    %v1222 = vpack.c.b16 %v1210, %v1209
    %v1223 = vpack.c.b16 %v1212, %v1211
    %v1224 = vpack.c.b16 %v1214, %v1213
    %v1225 = vpack.c.b16 %v1216, %v1215
    %v1226 = vpack.c.b16 %v1218, %v1217
    %1235 = vmatpush.bf16.msra.mxu0 %v1226
    %1236 = vmatpush.bf16.msra.mxu0 %v1225
    %1237 = vmatpush.bf16.msra.mxu0 %v1224
    %1238 = vmatpush.bf16.msra.mxu0 %v1223
    %1239 = vmatpush.bf16.msra.mxu0 %v1222
    %1240 = vmatpush.bf16.msra.mxu0 %v1221
    %1241 = vmatpush.bf16.msra.mxu0 %v1220
    %1242 = vmatpush.bf16.msra.mxu0 %v1219
    %1243 = vmatmul.bf16.gmra.mxu0 %v1147
    %v1244 = vpop.f32.mrf.mxu0
    %v1245 = vadd.f32 0.0, %v1244
    %v1246 = vpop.f32.mrf.mxu0
    %v1247 = vadd.f32 0.0, %v1246
    %1248 = vmatmul.bf16.gmra.mxu0 %v1148
    %v1249 = vpop.f32.mrf.mxu0
    %v1250 = vadd.f32 0.0, %v1249
    %v1251 = vpop.f32.mrf.mxu0
    %v1252 = vadd.f32 0.0, %v1251
    %1253 = vmatmul.bf16.gmra.mxu0 %v1149
    %v1254 = vpop.f32.mrf.mxu0
    %v1255 = vadd.f32 0.0, %v1254
    %v1256 = vpop.f32.mrf.mxu0
    %v1257 = vadd.f32 0.0, %v1256
    %1258 = vmatmul.bf16.gmra.mxu0 %v1150
    %v1259 = vpop.f32.mrf.mxu0
    %v1260 = vadd.f32 0.0, %v1259
    %v1261 = vpop.f32.mrf.mxu0
    %v1262 = vadd.f32 0.0, %v1261
    %1263 = vmatmul.bf16.gmra.mxu0 %v1151
    %v1264 = vpop.f32.mrf.mxu0
    %v1265 = vadd.f32 0.0, %v1264
    %v1266 = vpop.f32.mrf.mxu0
    %v1267 = vadd.f32 0.0, %v1266
    %1268 = vmatmul.bf16.gmra.mxu0 %v1152
    %v1269 = vpop.f32.mrf.mxu0
    %v1270 = vadd.f32 0.0, %v1269
    %v1271 = vpop.f32.mrf.mxu0
    %v1272 = vadd.f32 0.0, %v1271
    %1273 = vmatmul.bf16.gmra.mxu0 %v1153
    %v1274 = vpop.f32.mrf.mxu0
    %v1275 = vadd.f32 0.0, %v1274
    %v1276 = vpop.f32.mrf.mxu0
    %v1277 = vadd.f32 0.0, %v1276
    %1278 = vmatmul.bf16.gmra.mxu0 %v1154
    %v1279 = vpop.f32.mrf.mxu0
    %v1280 = vadd.f32 0.0, %v1279
    %v1281 = vpop.f32.mrf.mxu0
    %v1282 = vadd.f32 0.0, %v1281
    %1283 = vmatmul.bf16.gmra.mxu0 %v1155
    %v1284 = vpop.f32.mrf.mxu0
    %v1285 = vadd.f32 0.0, %v1284
    %v1286 = vpop.f32.mrf.mxu0
    %v1287 = vadd.f32 0.0, %v1286
    %1288 = vmatmul.bf16.gmra.mxu0 %v1156
    %v1289 = vpop.f32.mrf.mxu0
    %v1290 = vadd.f32 0.0, %v1289
    %v1291 = vpop.f32.mrf.mxu0
    %v1292 = vadd.f32 0.0, %v1291
    %1293 = vmatmul.bf16.gmra.mxu0 %v1157
    %v1294 = vpop.f32.mrf.mxu0
    %v1295 = vadd.f32 0.0, %v1294
    %v1296 = vpop.f32.mrf.mxu0
    %v1297 = vadd.f32 0.0, %v1296
    %1298 = vmatmul.bf16.gmra.mxu0 %v1158
    %v1299 = vpop.f32.mrf.mxu0
    %v1300 = vadd.f32 0.0, %v1299
    %v1301 = vpop.f32.mrf.mxu0
    %v1302 = vadd.f32 0.0, %v1301
    %1303 = vmatmul.bf16.gmra.mxu0 %v1159
    %v1304 = vpop.f32.mrf.mxu0
    %v1305 = vadd.f32 0.0, %v1304
    %v1306 = vpop.f32.mrf.mxu0
    %v1307 = vadd.f32 0.0, %v1306
    %1308 = vmatmul.bf16.gmra.mxu0 %v1160
    %v1309 = vpop.f32.mrf.mxu0
    %v1310 = vadd.f32 0.0, %v1309
    %v1311 = vpop.f32.mrf.mxu0
    %v1312 = vadd.f32 0.0, %v1311
    %1313 = vmatmul.bf16.gmra.mxu0 %v1161
    %v1314 = vpop.f32.mrf.mxu0
    %v1315 = vadd.f32 0.0, %v1314
    %v1316 = vpop.f32.mrf.mxu0
    %v1317 = vadd.f32 0.0, %v1316
    %1318 = vmatmul.bf16.gmra.mxu0 %v1162
    %v1319 = vpop.f32.mrf.mxu0
    %v1320 = vadd.f32 0.0, %v1319
    %v1321 = vpop.f32.mrf.mxu0
    %v1322 = vadd.f32 0.0, %v1321
    %1323 = vmatmul.bf16.gmra.mxu0 %v1163
    %v1324 = vpop.f32.mrf.mxu0
    %v1325 = vadd.f32 0.0, %v1324
    %v1326 = vpop.f32.mrf.mxu0
    %v1327 = vadd.f32 0.0, %v1326
    %1328 = vmatmul.bf16.gmra.mxu0 %v1164
    %v1329 = vpop.f32.mrf.mxu0
    %v1330 = vadd.f32 0.0, %v1329
    %v1331 = vpop.f32.mrf.mxu0
    %v1332 = vadd.f32 0.0, %v1331
    %1333 = vmatmul.bf16.gmra.mxu0 %v1165
    %v1334 = vpop.f32.mrf.mxu0
    %v1335 = vadd.f32 0.0, %v1334
    %v1336 = vpop.f32.mrf.mxu0
    %v1337 = vadd.f32 0.0, %v1336
    %1338 = vmatmul.bf16.gmra.mxu0 %v1166
    %v1339 = vpop.f32.mrf.mxu0
    %v1340 = vadd.f32 0.0, %v1339
    %v1341 = vpop.f32.mrf.mxu0
    %v1342 = vadd.f32 0.0, %v1341
    %1343 = vmatmul.bf16.gmra.mxu0 %v1167
    %v1344 = vpop.f32.mrf.mxu0
    %v1345 = vadd.f32 0.0, %v1344
    %v1346 = vpop.f32.mrf.mxu0
    %v1347 = vadd.f32 0.0, %v1346
    %1348 = vmatmul.bf16.gmra.mxu0 %v1168
    %v1349 = vpop.f32.mrf.mxu0
    %v1350 = vadd.f32 0.0, %v1349
    %v1351 = vpop.f32.mrf.mxu0
    %v1352 = vadd.f32 0.0, %v1351
    %1353 = vmatmul.bf16.gmra.mxu0 %v1169
    %v1354 = vpop.f32.mrf.mxu0
    %v1355 = vadd.f32 0.0, %v1354
    %v1356 = vpop.f32.mrf.mxu0
    %v1357 = vadd.f32 0.0, %v1356
    %1358 = vmatmul.bf16.gmra.mxu0 %v1170
    %v1359 = vpop.f32.mrf.mxu0
    %v1360 = vadd.f32 0.0, %v1359
    %v1361 = vpop.f32.mrf.mxu0
    %v1362 = vadd.f32 0.0, %v1361
    %1363 = vdwg.mxu0
    %v1364 = vpack.c.bf16 %v1247, %v1245
    %v1365 = vpack.c.bf16 %v1252, %v1250
    %v1366 = vpack.c.bf16 %v1257, %v1255
    %v1367 = vpack.c.bf16 %v1262, %v1260
    %v1368 = vpack.c.bf16 %v1267, %v1265
    %v1369 = vpack.c.bf16 %v1272, %v1270
    %v1370 = vpack.c.bf16 %v1277, %v1275
    %v1371 = vpack.c.bf16 %v1282, %v1280
    %v1372 = vpack.c.bf16 %v1287, %v1285
    %v1373 = vpack.c.bf16 %v1292, %v1290
    %v1374 = vpack.c.bf16 %v1297, %v1295
    %v1375 = vpack.c.bf16 %v1302, %v1300
    %v1376 = vpack.c.bf16 %v1307, %v1305
    %v1377 = vpack.c.bf16 %v1312, %v1310
    %v1378 = vpack.c.bf16 %v1317, %v1315
    %v1379 = vpack.c.bf16 %v1322, %v1320
    %v1380 = vpack.c.bf16 %v1327, %v1325
    %v1381 = vpack.c.bf16 %v1332, %v1330
    %v1382 = vpack.c.bf16 %v1337, %v1335
    %v1383 = vpack.c.bf16 %v1342, %v1340
    %v1384 = vpack.c.bf16 %v1347, %v1345
    %v1385 = vpack.c.bf16 %v1352, %v1350
    %v1386 = vpack.c.bf16 %v1357, %v1355
    %v1387 = vpack.c.bf16 %v1362, %v1360
    %v1388 = vld [vmem:[%s4] sm:$0x1]
    %v1390 = vperm.slane %v1388, 0
    %1392 = vmatpush.bf16.msra.mxu0 %v1371
    %1393 = vmatpush.bf16.msra.mxu0 %v1370
    %1394 = vmatpush.bf16.msra.mxu0 %v1369
    %1395 = vmatpush.bf16.msra.mxu0 %v1368
    %1396 = vmatpush.bf16.msra.mxu0 %v1367
    %1397 = vmatpush.bf16.msra.mxu0 %v1366
    %1398 = vmatpush.bf16.msra.mxu0 %v1365
    %1399 = vmatpush.bf16.msra.mxu0 %v1364
    %1400 = vmatmul.bf16.gmra.mxu0 %v424
    %v1401 = vpop.f32.mrf.mxu0
    %v1402 = vadd.f32 %v1390, %v1401
    %v1403 = vpop.f32.mrf.mxu0
    %v1404 = vadd.f32 %v1390, %v1403
    %1405 = vmatmul.bf16.gmra.mxu0 %v427
    %v1406 = vpop.f32.mrf.mxu0
    %v1407 = vadd.f32 %v1390, %v1406
    %v1408 = vpop.f32.mrf.mxu0
    %v1409 = vadd.f32 %v1390, %v1408
    %1410 = vmatmul.bf16.gmra.mxu0 %v430
    %v1411 = vpop.f32.mrf.mxu0
    %v1412 = vadd.f32 %v1390, %v1411
    %v1413 = vpop.f32.mrf.mxu0
    %v1414 = vadd.f32 %v1390, %v1413
    %1415 = vmatmul.bf16.gmra.mxu0 %v433
    %v1416 = vpop.f32.mrf.mxu0
    %v1417 = vadd.f32 %v1390, %v1416
    %v1418 = vpop.f32.mrf.mxu0
    %v1419 = vadd.f32 %v1390, %v1418
    %1420 = vmatmul.bf16.gmra.mxu0 %v436
    %v1421 = vpop.f32.mrf.mxu0
    %v1422 = vadd.f32 %v1390, %v1421
    %v1423 = vpop.f32.mrf.mxu0
    %v1424 = vadd.f32 %v1390, %v1423
    %1425 = vmatmul.bf16.gmra.mxu0 %v439
    %v1426 = vpop.f32.mrf.mxu0
    %v1427 = vadd.f32 %v1390, %v1426
    %v1428 = vpop.f32.mrf.mxu0
    %v1429 = vadd.f32 %v1390, %v1428
    %1430 = vmatmul.bf16.gmra.mxu0 %v442
    %v1431 = vpop.f32.mrf.mxu0
    %v1432 = vadd.f32 %v1390, %v1431
    %v1433 = vpop.f32.mrf.mxu0
    %v1434 = vadd.f32 %v1390, %v1433
    %1435 = vmatmul.bf16.gmra.mxu0 %v445
    %v1436 = vpop.f32.mrf.mxu0
    %v1437 = vadd.f32 %v1390, %v1436
    %v1438 = vpop.f32.mrf.mxu0
    %v1439 = vadd.f32 %v1390, %v1438
    %1440 = vmatmul.bf16.gmra.mxu0 %v448
    %v1441 = vpop.f32.mrf.mxu0
    %v1442 = vadd.f32 %v1390, %v1441
    %v1443 = vpop.f32.mrf.mxu0
    %v1444 = vadd.f32 %v1390, %v1443
    %1445 = vmatmul.bf16.gmra.mxu0 %v451
    %v1446 = vpop.f32.mrf.mxu0
    %v1447 = vadd.f32 %v1390, %v1446
    %v1448 = vpop.f32.mrf.mxu0
    %v1449 = vadd.f32 %v1390, %v1448
    %1450 = vmatmul.bf16.gmra.mxu0 %v454
    %v1451 = vpop.f32.mrf.mxu0
    %v1452 = vadd.f32 %v1390, %v1451
    %v1453 = vpop.f32.mrf.mxu0
    %v1454 = vadd.f32 %v1390, %v1453
    %1455 = vmatmul.bf16.gmra.mxu0 %v457
    %v1456 = vpop.f32.mrf.mxu0
    %v1457 = vadd.f32 %v1390, %v1456
    %v1458 = vpop.f32.mrf.mxu0
    %v1459 = vadd.f32 %v1390, %v1458
    %1460 = vmatmul.bf16.gmra.mxu0 %v460
    %v1461 = vpop.f32.mrf.mxu0
    %v1462 = vadd.f32 %v1390, %v1461
    %v1463 = vpop.f32.mrf.mxu0
    %v1464 = vadd.f32 %v1390, %v1463
    %1465 = vmatmul.bf16.gmra.mxu0 %v463
    %v1466 = vpop.f32.mrf.mxu0
    %v1467 = vadd.f32 %v1390, %v1466
    %v1468 = vpop.f32.mrf.mxu0
    %v1469 = vadd.f32 %v1390, %v1468
    %1470 = vmatmul.bf16.gmra.mxu0 %v466
    %v1471 = vpop.f32.mrf.mxu0
    %v1472 = vadd.f32 %v1390, %v1471
    %v1473 = vpop.f32.mrf.mxu0
    %v1474 = vadd.f32 %v1390, %v1473
    %1475 = vmatmul.bf16.gmra.mxu0 %v469
    %v1476 = vpop.f32.mrf.mxu0
    %v1477 = vadd.f32 %v1390, %v1476
    %v1478 = vpop.f32.mrf.mxu0
    %v1479 = vadd.f32 %v1390, %v1478
    %1480 = vmatmul.bf16.gmra.mxu0 %v472
    %v1481 = vpop.f32.mrf.mxu0
    %v1482 = vadd.f32 %v1390, %v1481
    %v1483 = vpop.f32.mrf.mxu0
    %v1484 = vadd.f32 %v1390, %v1483
    %1485 = vmatmul.bf16.gmra.mxu0 %v475
    %v1486 = vpop.f32.mrf.mxu0
    %v1487 = vadd.f32 %v1390, %v1486
    %v1488 = vpop.f32.mrf.mxu0
    %v1489 = vadd.f32 %v1390, %v1488
    %1490 = vmatmul.bf16.gmra.mxu0 %v478
    %v1491 = vpop.f32.mrf.mxu0
    %v1492 = vadd.f32 %v1390, %v1491
    %v1493 = vpop.f32.mrf.mxu0
    %v1494 = vadd.f32 %v1390, %v1493
    %1495 = vmatmul.bf16.gmra.mxu0 %v481
    %v1496 = vpop.f32.mrf.mxu0
    %v1497 = vadd.f32 %v1390, %v1496
    %v1498 = vpop.f32.mrf.mxu0
    %v1499 = vadd.f32 %v1390, %v1498
    %1500 = vmatmul.bf16.gmra.mxu0 %v484
    %v1501 = vpop.f32.mrf.mxu0
    %v1502 = vadd.f32 %v1390, %v1501
    %v1503 = vpop.f32.mrf.mxu0
    %v1504 = vadd.f32 %v1390, %v1503
    %1505 = vmatmul.bf16.gmra.mxu0 %v487
    %v1506 = vpop.f32.mrf.mxu0
    %v1507 = vadd.f32 %v1390, %v1506
    %v1508 = vpop.f32.mrf.mxu0
    %v1509 = vadd.f32 %v1390, %v1508
    %1510 = vmatmul.bf16.gmra.mxu0 %v490
    %v1511 = vpop.f32.mrf.mxu0
    %v1512 = vadd.f32 %v1390, %v1511
    %v1513 = vpop.f32.mrf.mxu0
    %v1514 = vadd.f32 %v1390, %v1513
    %1515 = vmatmul.bf16.gmra.mxu0 %v493
    %v1516 = vpop.f32.mrf.mxu0
    %v1517 = vadd.f32 %v1390, %v1516
    %v1518 = vpop.f32.mrf.mxu0
    %v1519 = vadd.f32 %v1390, %v1518
    %1520 = vdwg.mxu0
    %1521 = vmatpush.bf16.msra.mxu0 %v1379
    %1522 = vmatpush.bf16.msra.mxu0 %v1378
    %1523 = vmatpush.bf16.msra.mxu0 %v1377
    %1524 = vmatpush.bf16.msra.mxu0 %v1376
    %1525 = vmatpush.bf16.msra.mxu0 %v1375
    %1526 = vmatpush.bf16.msra.mxu0 %v1374
    %1527 = vmatpush.bf16.msra.mxu0 %v1373
    %1528 = vmatpush.bf16.msra.mxu0 %v1372
    %1529 = vmatmul.bf16.gmra.mxu0 %v425
    %v1530 = vpop.f32.mrf.mxu0
    %v1531 = vadd.f32 %v1402, %v1530
    %v1532 = vpop.f32.mrf.mxu0
    %v1533 = vadd.f32 %v1404, %v1532
    %1534 = vmatmul.bf16.gmra.mxu0 %v428
    %v1535 = vpop.f32.mrf.mxu0
    %v1536 = vadd.f32 %v1407, %v1535
    %v1537 = vpop.f32.mrf.mxu0
    %v1538 = vadd.f32 %v1409, %v1537
    %1539 = vmatmul.bf16.gmra.mxu0 %v431
    %v1540 = vpop.f32.mrf.mxu0
    %v1541 = vadd.f32 %v1412, %v1540
    %v1542 = vpop.f32.mrf.mxu0
    %v1543 = vadd.f32 %v1414, %v1542
    %1544 = vmatmul.bf16.gmra.mxu0 %v434
    %v1545 = vpop.f32.mrf.mxu0
    %v1546 = vadd.f32 %v1417, %v1545
    %v1547 = vpop.f32.mrf.mxu0
    %v1548 = vadd.f32 %v1419, %v1547
    %1549 = vmatmul.bf16.gmra.mxu0 %v437
    %v1550 = vpop.f32.mrf.mxu0
    %v1551 = vadd.f32 %v1422, %v1550
    %v1552 = vpop.f32.mrf.mxu0
    %v1553 = vadd.f32 %v1424, %v1552
    %1554 = vmatmul.bf16.gmra.mxu0 %v440
    %v1555 = vpop.f32.mrf.mxu0
    %v1556 = vadd.f32 %v1427, %v1555
    %v1557 = vpop.f32.mrf.mxu0
    %v1558 = vadd.f32 %v1429, %v1557
    %1559 = vmatmul.bf16.gmra.mxu0 %v443
    %v1560 = vpop.f32.mrf.mxu0
    %v1561 = vadd.f32 %v1432, %v1560
    %v1562 = vpop.f32.mrf.mxu0
    %v1563 = vadd.f32 %v1434, %v1562
    %1564 = vmatmul.bf16.gmra.mxu0 %v446
    %v1565 = vpop.f32.mrf.mxu0
    %v1566 = vadd.f32 %v1437, %v1565
    %v1567 = vpop.f32.mrf.mxu0
    %v1568 = vadd.f32 %v1439, %v1567
    %1569 = vmatmul.bf16.gmra.mxu0 %v449
    %v1570 = vpop.f32.mrf.mxu0
    %v1571 = vadd.f32 %v1442, %v1570
    %v1572 = vpop.f32.mrf.mxu0
    %v1573 = vadd.f32 %v1444, %v1572
    %1574 = vmatmul.bf16.gmra.mxu0 %v452
    %v1575 = vpop.f32.mrf.mxu0
    %v1576 = vadd.f32 %v1447, %v1575
    %v1577 = vpop.f32.mrf.mxu0
    %v1578 = vadd.f32 %v1449, %v1577
    %1579 = vmatmul.bf16.gmra.mxu0 %v455
    %v1580 = vpop.f32.mrf.mxu0
    %v1581 = vadd.f32 %v1452, %v1580
    %v1582 = vpop.f32.mrf.mxu0
    %v1583 = vadd.f32 %v1454, %v1582
    %1584 = vmatmul.bf16.gmra.mxu0 %v458
    %v1585 = vpop.f32.mrf.mxu0
    %v1586 = vadd.f32 %v1457, %v1585
    %v1587 = vpop.f32.mrf.mxu0
    %v1588 = vadd.f32 %v1459, %v1587
    %1589 = vmatmul.bf16.gmra.mxu0 %v461
    %v1590 = vpop.f32.mrf.mxu0
    %v1591 = vadd.f32 %v1462, %v1590
    %v1592 = vpop.f32.mrf.mxu0
    %v1593 = vadd.f32 %v1464, %v1592
    %1594 = vmatmul.bf16.gmra.mxu0 %v464
    %v1595 = vpop.f32.mrf.mxu0
    %v1596 = vadd.f32 %v1467, %v1595
    %v1597 = vpop.f32.mrf.mxu0
    %v1598 = vadd.f32 %v1469, %v1597
    %1599 = vmatmul.bf16.gmra.mxu0 %v467
    %v1600 = vpop.f32.mrf.mxu0
    %v1601 = vadd.f32 %v1472, %v1600
    %v1602 = vpop.f32.mrf.mxu0
    %v1603 = vadd.f32 %v1474, %v1602
    %1604 = vmatmul.bf16.gmra.mxu0 %v470
    %v1605 = vpop.f32.mrf.mxu0
    %v1606 = vadd.f32 %v1477, %v1605
    %v1607 = vpop.f32.mrf.mxu0
    %v1608 = vadd.f32 %v1479, %v1607
    %1609 = vmatmul.bf16.gmra.mxu0 %v473
    %v1610 = vpop.f32.mrf.mxu0
    %v1611 = vadd.f32 %v1482, %v1610
    %v1612 = vpop.f32.mrf.mxu0
    %v1613 = vadd.f32 %v1484, %v1612
    %1614 = vmatmul.bf16.gmra.mxu0 %v476
    %v1615 = vpop.f32.mrf.mxu0
    %v1616 = vadd.f32 %v1487, %v1615
    %v1617 = vpop.f32.mrf.mxu0
    %v1618 = vadd.f32 %v1489, %v1617
    %1619 = vmatmul.bf16.gmra.mxu0 %v479
    %v1620 = vpop.f32.mrf.mxu0
    %v1621 = vadd.f32 %v1492, %v1620
    %v1622 = vpop.f32.mrf.mxu0
    %v1623 = vadd.f32 %v1494, %v1622
    %1624 = vmatmul.bf16.gmra.mxu0 %v482
    %v1625 = vpop.f32.mrf.mxu0
    %v1626 = vadd.f32 %v1497, %v1625
    %v1627 = vpop.f32.mrf.mxu0
    %v1628 = vadd.f32 %v1499, %v1627
    %1629 = vmatmul.bf16.gmra.mxu0 %v485
    %v1630 = vpop.f32.mrf.mxu0
    %v1631 = vadd.f32 %v1502, %v1630
    %v1632 = vpop.f32.mrf.mxu0
    %v1633 = vadd.f32 %v1504, %v1632
    %1634 = vmatmul.bf16.gmra.mxu0 %v488
    %v1635 = vpop.f32.mrf.mxu0
    %v1636 = vadd.f32 %v1507, %v1635
    %v1637 = vpop.f32.mrf.mxu0
    %v1638 = vadd.f32 %v1509, %v1637
    %1639 = vmatmul.bf16.gmra.mxu0 %v491
    %v1640 = vpop.f32.mrf.mxu0
    %v1641 = vadd.f32 %v1512, %v1640
    %v1642 = vpop.f32.mrf.mxu0
    %v1643 = vadd.f32 %v1514, %v1642
    %1644 = vmatmul.bf16.gmra.mxu0 %v494
    %v1645 = vpop.f32.mrf.mxu0
    %v1646 = vadd.f32 %v1517, %v1645
    %v1647 = vpop.f32.mrf.mxu0
    %v1648 = vadd.f32 %v1519, %v1647
    %1649 = vdwg.mxu0
    %1650 = vmatpush.bf16.msra.mxu0 %v1387
    %1651 = vmatpush.bf16.msra.mxu0 %v1386
    %1652 = vmatpush.bf16.msra.mxu0 %v1385
    %1653 = vmatpush.bf16.msra.mxu0 %v1384
    %1654 = vmatpush.bf16.msra.mxu0 %v1383
    %1655 = vmatpush.bf16.msra.mxu0 %v1382
    %1656 = vmatpush.bf16.msra.mxu0 %v1381
    %1657 = vmatpush.bf16.msra.mxu0 %v1380
    %1658 = vmatmul.bf16.gmra.mxu0 %v426
    %v1659 = vpop.f32.mrf.mxu0
    %v1660 = vadd.f32 %v1531, %v1659
    %v1661 = vpop.f32.mrf.mxu0
    %v1662 = vadd.f32 %v1533, %v1661
    %1663 = vmatmul.bf16.gmra.mxu0 %v429
    %v1664 = vpop.f32.mrf.mxu0
    %v1665 = vadd.f32 %v1536, %v1664
    %v1666 = vpop.f32.mrf.mxu0
    %v1667 = vadd.f32 %v1538, %v1666
    %1668 = vmatmul.bf16.gmra.mxu0 %v432
    %v1669 = vpop.f32.mrf.mxu0
    %v1670 = vadd.f32 %v1541, %v1669
    %v1671 = vpop.f32.mrf.mxu0
    %v1672 = vadd.f32 %v1543, %v1671
    %1673 = vmatmul.bf16.gmra.mxu0 %v435
    %v1674 = vpop.f32.mrf.mxu0
    %v1675 = vadd.f32 %v1546, %v1674
    %v1676 = vpop.f32.mrf.mxu0
    %v1677 = vadd.f32 %v1548, %v1676
    %1678 = vmatmul.bf16.gmra.mxu0 %v438
    %v1679 = vpop.f32.mrf.mxu0
    %v1680 = vadd.f32 %v1551, %v1679
    %v1681 = vpop.f32.mrf.mxu0
    %v1682 = vadd.f32 %v1553, %v1681
    %1683 = vmatmul.bf16.gmra.mxu0 %v441
    %v1684 = vpop.f32.mrf.mxu0
    %v1685 = vadd.f32 %v1556, %v1684
    %v1686 = vpop.f32.mrf.mxu0
    %v1687 = vadd.f32 %v1558, %v1686
    %1688 = vmatmul.bf16.gmra.mxu0 %v444
    %v1689 = vpop.f32.mrf.mxu0
    %v1690 = vadd.f32 %v1561, %v1689
    %v1691 = vpop.f32.mrf.mxu0
    %v1692 = vadd.f32 %v1563, %v1691
    %1693 = vmatmul.bf16.gmra.mxu0 %v447
    %v1694 = vpop.f32.mrf.mxu0
    %v1695 = vadd.f32 %v1566, %v1694
    %v1696 = vpop.f32.mrf.mxu0
    %v1697 = vadd.f32 %v1568, %v1696
    %1698 = vmatmul.bf16.gmra.mxu0 %v450
    %v1699 = vpop.f32.mrf.mxu0
    %v1700 = vadd.f32 %v1571, %v1699
    %v1701 = vpop.f32.mrf.mxu0
    %v1702 = vadd.f32 %v1573, %v1701
    %1703 = vmatmul.bf16.gmra.mxu0 %v453
    %v1704 = vpop.f32.mrf.mxu0
    %v1705 = vadd.f32 %v1576, %v1704
    %v1706 = vpop.f32.mrf.mxu0
    %v1707 = vadd.f32 %v1578, %v1706
    %1708 = vmatmul.bf16.gmra.mxu0 %v456
    %v1709 = vpop.f32.mrf.mxu0
    %v1710 = vadd.f32 %v1581, %v1709
    %v1711 = vpop.f32.mrf.mxu0
    %v1712 = vadd.f32 %v1583, %v1711
    %1713 = vmatmul.bf16.gmra.mxu0 %v459
    %v1714 = vpop.f32.mrf.mxu0
    %v1715 = vadd.f32 %v1586, %v1714
    %v1716 = vpop.f32.mrf.mxu0
    %v1717 = vadd.f32 %v1588, %v1716
    %1718 = vmatmul.bf16.gmra.mxu0 %v462
    %v1719 = vpop.f32.mrf.mxu0
    %v1720 = vadd.f32 %v1591, %v1719
    %v1721 = vpop.f32.mrf.mxu0
    %v1722 = vadd.f32 %v1593, %v1721
    %1723 = vmatmul.bf16.gmra.mxu0 %v465
    %v1724 = vpop.f32.mrf.mxu0
    %v1725 = vadd.f32 %v1596, %v1724
    %v1726 = vpop.f32.mrf.mxu0
    %v1727 = vadd.f32 %v1598, %v1726
    %1728 = vmatmul.bf16.gmra.mxu0 %v468
    %v1729 = vpop.f32.mrf.mxu0
    %v1730 = vadd.f32 %v1601, %v1729
    %v1731 = vpop.f32.mrf.mxu0
    %v1732 = vadd.f32 %v1603, %v1731
    %1733 = vmatmul.bf16.gmra.mxu0 %v471
    %v1734 = vpop.f32.mrf.mxu0
    %v1735 = vadd.f32 %v1606, %v1734
    %v1736 = vpop.f32.mrf.mxu0
    %v1737 = vadd.f32 %v1608, %v1736
    %1738 = vmatmul.bf16.gmra.mxu0 %v474
    %v1739 = vpop.f32.mrf.mxu0
    %v1740 = vadd.f32 %v1611, %v1739
    %v1741 = vpop.f32.mrf.mxu0
    %v1742 = vadd.f32 %v1613, %v1741
    %1743 = vmatmul.bf16.gmra.mxu0 %v477
    %v1744 = vpop.f32.mrf.mxu0
    %v1745 = vadd.f32 %v1616, %v1744
    %v1746 = vpop.f32.mrf.mxu0
    %v1747 = vadd.f32 %v1618, %v1746
    %1748 = vmatmul.bf16.gmra.mxu0 %v480
    %v1749 = vpop.f32.mrf.mxu0
    %v1750 = vadd.f32 %v1621, %v1749
    %v1751 = vpop.f32.mrf.mxu0
    %v1752 = vadd.f32 %v1623, %v1751
    %1753 = vmatmul.bf16.gmra.mxu0 %v483
    %v1754 = vpop.f32.mrf.mxu0
    %v1755 = vadd.f32 %v1626, %v1754
    %v1756 = vpop.f32.mrf.mxu0
    %v1757 = vadd.f32 %v1628, %v1756
    %1758 = vmatmul.bf16.gmra.mxu0 %v486
    %v1759 = vpop.f32.mrf.mxu0
    %v1760 = vadd.f32 %v1631, %v1759
    %v1761 = vpop.f32.mrf.mxu0
    %v1762 = vadd.f32 %v1633, %v1761
    %1763 = vmatmul.bf16.gmra.mxu0 %v489
    %v1764 = vpop.f32.mrf.mxu0
    %v1765 = vadd.f32 %v1636, %v1764
    %v1766 = vpop.f32.mrf.mxu0
    %v1767 = vadd.f32 %v1638, %v1766
    %1768 = vmatmul.bf16.gmra.mxu0 %v492
    %v1769 = vpop.f32.mrf.mxu0
    %v1770 = vadd.f32 %v1641, %v1769
    %v1771 = vpop.f32.mrf.mxu0
    %v1772 = vadd.f32 %v1643, %v1771
    %1773 = vmatmul.bf16.gmra.mxu0 %v495
    %v1774 = vpop.f32.mrf.mxu0
    %v1775 = vadd.f32 %v1646, %v1774
    %v1776 = vpop.f32.mrf.mxu0
    %v1777 = vadd.f32 %v1648, %v1776
    %1778 = vdwg.mxu0
    %1779 = vst [vmem:[%s5] sm:$0xff] %v1660
    %1780 = vst [vmem:[%s5 + $0x8] sm:$0xff] %v1662
    %1781 = vst [vmem:[%s5 + $0x10] sm:$0xff] %v1665
    %1782 = vst [vmem:[%s5 + $0x18] sm:$0xff] %v1667
    %1783 = vst [vmem:[%s5 + $0x20] sm:$0xff] %v1670
    %1784 = vst [vmem:[%s5 + $0x28] sm:$0xff] %v1672
    %1785 = vst [vmem:[%s5 + $0x30] sm:$0xff] %v1675
    %1786 = vst [vmem:[%s5 + $0x38] sm:$0xff] %v1677
    %1787 = vst [vmem:[%s5 + $0x40] sm:$0xff] %v1680
    %1788 = vst [vmem:[%s5 + $0x48] sm:$0xff] %v1682
    %1789 = vst [vmem:[%s5 + $0x50] sm:$0xff] %v1685
    %1790 = vst [vmem:[%s5 + $0x58] sm:$0xff] %v1687
    %1791 = vst [vmem:[%s5 + $0x60] sm:$0xff] %v1690
    %1792 = vst [vmem:[%s5 + $0x68] sm:$0xff] %v1692
    %1793 = vst [vmem:[%s5 + $0x70] sm:$0xff] %v1695
    %1794 = vst [vmem:[%s5 + $0x78] sm:$0xff] %v1697
    %1795 = vst [vmem:[%s5 + $0x80] sm:$0xff] %v1700
    %1796 = vst [vmem:[%s5 + $0x88] sm:$0xff] %v1702
    %1797 = vst [vmem:[%s5 + $0x90] sm:$0xff] %v1705
    %1798 = vst [vmem:[%s5 + $0x98] sm:$0xff] %v1707
    %1799 = vst [vmem:[%s5 + $0xa0] sm:$0xff] %v1710
    %1800 = vst [vmem:[%s5 + $0xa8] sm:$0xff] %v1712
    %1801 = vst [vmem:[%s5 + $0xb0] sm:$0xff] %v1715
    %1802 = vst [vmem:[%s5 + $0xb8] sm:$0xff] %v1717
    %1803 = vst [vmem:[%s5 + $0xc0] sm:$0xff] %v1720
    %1804 = vst [vmem:[%s5 + $0xc8] sm:$0xff] %v1722
    %1805 = vst [vmem:[%s5 + $0xd0] sm:$0xff] %v1725
    %1806 = vst [vmem:[%s5 + $0xd8] sm:$0xff] %v1727
    %1807 = vst [vmem:[%s5 + $0xe0] sm:$0xff] %v1730
    %1808 = vst [vmem:[%s5 + $0xe8] sm:$0xff] %v1732
    %1809 = vst [vmem:[%s5 + $0xf0] sm:$0xff] %v1735
    %1810 = vst [vmem:[%s5 + $0xf8] sm:$0xff] %v1737
    %1811 = vst [vmem:[%s5 + $0x100] sm:$0xff] %v1740
    %1812 = vst [vmem:[%s5 + $0x108] sm:$0xff] %v1742
    %1813 = vst [vmem:[%s5 + $0x110] sm:$0xff] %v1745
    %1814 = vst [vmem:[%s5 + $0x118] sm:$0xff] %v1747
    %1815 = vst [vmem:[%s5 + $0x120] sm:$0xff] %v1750
    %1816 = vst [vmem:[%s5 + $0x128] sm:$0xff] %v1752
    %1817 = vst [vmem:[%s5 + $0x130] sm:$0xff] %v1755
    %1818 = vst [vmem:[%s5 + $0x138] sm:$0xff] %v1757
    %1819 = vst [vmem:[%s5 + $0x140] sm:$0xff] %v1760
    %1820 = vst [vmem:[%s5 + $0x148] sm:$0xff] %v1762
    %1821 = vst [vmem:[%s5 + $0x150] sm:$0xff] %v1765
    %1822 = vst [vmem:[%s5 + $0x158] sm:$0xff] %v1767
    %1823 = vst [vmem:[%s5 + $0x160] sm:$0xff] %v1770
    %1824 = vst [vmem:[%s5 + $0x168] sm:$0xff] %v1772
    %1825 = vst [vmem:[%s5 + $0x170] sm:$0xff] %v1775
    %1826 = vst [vmem:[%s5 + $0x178] sm:$0xff] %v1777
    // Predicated region
    $region26: #{gcn_encoder.1} parent=1 // pred_check
      _
    $region27: #{gcn_encoder.1} parent=1 // pred_check_branch
      %1828 = sbr.rel (0) target = $region29
    $region28: #{gcn_encoder.1} parent=1 // pred_region
      _
    $region29: #{gcn_encoder.1} parent=1 // pred_fallthru
      _
    // Predicated region
    $region30: #{gcn_encoder.1} parent=1 // pred_check
      _
    $region31: #{gcn_encoder.1} parent=1 // pred_check_branch
      %1830 = sbr.rel (0) target = $region33
    $region32: #{gcn_encoder.1} parent=1 // pred_region
      _
    $region33: #{gcn_encoder.1} parent=1 // pred_fallthru
      _
    %1831 = vsyncpa [#allocation3], 1

</llo_original>
